<compile_context>
chip_gen: v5e
topology: v5e:2x2
jax: 0.10.0
libtpu: 0.0.40
codegen_flags: <defaults>
</compile_context>

<pallas_src>
import functools
import math

import jax
import jax.numpy as jnp
from jax import lax
from jax.experimental import pallas as pl
from jax.experimental.pallas import tpu as pltpu


def _pick_tile(dim, pref):
    """Largest tile in {pref,1024,512,256,128} that divides `dim`; else the whole dim."""
    for cand in (pref, 1024, 512, 256, 128):
        if cand <= dim and dim % cand == 0:
            return cand
    return dim


# --------------------------- plain tiled matmul kernel (o_proj) ---------------------------

def _matmul_kernel(x_ref, w_ref, o_ref, acc_ref):
    @pl.when(pl.program_id(2) == 0)
    def _init():
        acc_ref[...] = jnp.zeros(acc_ref.shape, jnp.float32)

    acc_ref[...] += jnp.dot(x_ref[...], w_ref[...],
                            preferred_element_type=jnp.float32)

    @pl.when(pl.program_id(2) == pl.num_programs(2) - 1)
    def _store():
        o_ref[...] = acc_ref[...].astype(o_ref.dtype)


def pallas_matmul(x, w, out_dtype, tm=512, tn=512, tk=512):
    """x:[M,K] @ w:[K,N] -> [M,N]; bf16 inputs, f32 accumulation."""
    M, K = x.shape
    K2, N = w.shape
    assert K == K2
    tm, tn, tk = _pick_tile(M, tm), _pick_tile(N, tn), _pick_tile(K, tk)
    return pl.pallas_call(
        _matmul_kernel,
        out_shape=jax.ShapeDtypeStruct((M, N), out_dtype),
        grid_spec=pltpu.PrefetchScalarGridSpec(
            num_scalar_prefetch=0,
            grid=(M // tm, N // tn, K // tk),
            in_specs=[pl.BlockSpec((tm, tk), lambda i, j, k: (i, k)),
                      pl.BlockSpec((tk, tn), lambda i, j, k: (k, j))],
            out_specs=pl.BlockSpec((tm, tn), lambda i, j, k: (i, j)),
            scratch_shapes=[pltpu.VMEM((tm, tn), jnp.float32)]),
        compiler_params=pltpu.CompilerParams(
            dimension_semantics=("parallel", "parallel", "arbitrary"),
            vmem_limit_bytes=32 * 1024 * 1024),
    )(x, w)


# --------------- fused QKV projection + per-head RMSNorm + NeoX RoPE (+scale) ---------------

def _qkv_norm_rope_kernel(x_ref, w_ref, nw_ref, cos_ref, sin_ref, o_ref, acc_ref, *,
                          eps, qk_blocks, heads_per_tile, head_dim, half):
    j = pl.program_id(1)
    kk = pl.program_id(2)

    @pl.when(kk == 0)
    def _init():
        acc_ref[...] = jnp.zeros(acc_ref.shape, jnp.float32)

    acc_ref[...] += jnp.dot(x_ref[...], w_ref[...],
                            preferred_element_type=jnp.float32)

    @pl.when(kk == pl.num_programs(2) - 1)
    def _store():
        # q/k column tiles: per-head RMSNorm (scale folded into the q norm weights) + NeoX RoPE,
        # applied directly on the f32 accumulator -- no extra HBM round trip.
        @pl.when(j < qk_blocks)
        def _qk():
            acc = acc_ref[...]                       # [tm, tn] f32
            cos = cos_ref[...]                       # [tm, D]  f32
            sin = sin_ref[...]                       # [tm, D]  f32 (sign-folded)
            outs = []
            for h in range(heads_per_tile):          # unrolled over heads in this column tile
                xh = acc[:, h * head_dim:(h + 1) * head_dim]
                wh = nw_ref[:, h * head_dim:(h + 1) * head_dim]        # [1, D]
                var = jnp.mean(xh * xh, axis=-1, keepdims=True)
                xn = xh * lax.rsqrt(var + eps) * wh
                # Lane-dense rotate-half: roll by D/2 gives [x2, x1]; sin table carries the sign.
                rot = pltpu.roll(xn, half, 1)
                outs.append(xn * cos + rot * sin)
            o_ref[...] = jnp.concatenate(outs, axis=-1).astype(o_ref.dtype)

        # v column tiles: plain cast-out.
        @pl.when(j >= qk_blocks)
        def _v():
            o_ref[...] = acc_ref[...].astype(o_ref.dtype)


def pallas_qkv_norm_rope(x, w, norm_w, cos_full, sin_signed, *,
                         num_heads, num_kv_heads, head_dim, eps,
                         tm=512, tn=512, tk=512):
    """x:[T,hidden] @ w:[hidden,(Hq+2*Hkv)*D] with norm/rope/scale epilogue on the q/k columns."""
    M, K = x.shape
    K2, N = w.shape
    assert K == K2
    D = head_dim
    qk_cols = (num_heads + num_kv_heads) * D
    # tn must be a multiple of head_dim and divide both qk_cols and N (so tiles never straddle the
    # q/k | v boundary). gcd(qk_cols, N) is a multiple of D, so a valid tn always exists.
    gc = math.gcd(qk_cols, N)
    tn_sel, c = D, D
    while c <= min(gc, tn):
        if gc % c == 0:
            tn_sel = c
        c += D
    tn = tn_sel
    tm, tk = _pick_tile(M, tm), _pick_tile(K, tk)
    qk_blocks = qk_cols // tn
    heads_per_tile = tn // D
    kernel = functools.partial(_qkv_norm_rope_kernel, eps=eps, qk_blocks=qk_blocks,
                               heads_per_tile=heads_per_tile, head_dim=D, half=D // 2)
    return pl.pallas_call(
        kernel,
        out_shape=jax.ShapeDtypeStruct((M, N), jnp.bfloat16),
        grid_spec=pltpu.PrefetchScalarGridSpec(
            num_scalar_prefetch=0,
            grid=(M // tm, N // tn, K // tk),
            in_specs=[
                pl.BlockSpec((tm, tk), lambda i, j, k: (i, k)),
                pl.BlockSpec((tk, tn), lambda i, j, k: (k, j)),
                # per-column norm weights (q rows pre-scaled); clamp j for the v-region tiles
                pl.BlockSpec((1, tn),
                             lambda i, j, k: (0, jnp.minimum(j, qk_blocks - 1))),
                pl.BlockSpec((tm, D), lambda i, j, k: (i, 0)),   # cos (full width)
                pl.BlockSpec((tm, D), lambda i, j, k: (i, 0)),   # sin (signed, full width)
            ],
            out_specs=pl.BlockSpec((tm, tn), lambda i, j, k: (i, j)),
            scratch_shapes=[pltpu.VMEM((tm, tn), jnp.float32)]),
        compiler_params=pltpu.CompilerParams(
            dimension_semantics=("parallel", "parallel", "arbitrary"),
            vmem_limit_bytes=32 * 1024 * 1024),
    )(x, w, norm_w, cos_full, sin_signed)


# -------------------------- causal flash attention (GQA) kernel --------------------------

_NEG_INF = -1e30   # finite mask value: no exp(-inf - -inf) NaNs on masked tiles


def _flash_kernel(q_ref, k_ref, v_ref, o_ref, m_ref, l_ref, acc_ref, *,
                  group, head_dim, tq, tkv):
    qi = pl.program_id(0)
    kj = pl.program_id(2)

    @pl.when(kj == 0)
    def _init():
        m_ref[...] = jnp.full(m_ref.shape, _NEG_INF, jnp.float32)
        l_ref[...] = jnp.zeros(l_ref.shape, jnp.float32)
        acc_ref[...] = jnp.zeros(acc_ref.shape, jnp.float32)

    q_start = qi * tq
    k_start = kj * tkv
    # Tile classification: fully below diagonal (no mask), straddling (mask), above (skip).
    below = (k_start + (tkv - 1)) <= q_start
    straddle = jnp.logical_and(k_start <= q_start + (tq - 1),
                               (k_start + (tkv - 1)) > q_start)

    def update(masked):
        k = k_ref[...]                                         # [tkv, D] bf16
        v = v_ref[...]                                         # [tkv, D] bf16
        if masked:
            row = q_start + lax.broadcasted_iota(jnp.int32, (tq, tkv), 0)
            col = k_start + lax.broadcasted_iota(jnp.int32, (tq, tkv), 1)
            causal = col <= row
        for g in range(group):                                 # unrolled over the GQA group
            q = q_ref[:, g * head_dim:(g + 1) * head_dim]      # [tq, D]  (q already scaled)
            s = lax.dot_general(q, k, (((1,), (1,)), ((), ())),
                                preferred_element_type=jnp.float32)
            if masked:
                s = jnp.where(causal, s, _NEG_INF)
            m_prev = m_ref[g]
            m_new = jnp.maximum(m_prev, jnp.max(s, axis=-1, keepdims=True))
            alpha = jnp.exp(m_prev - m_new)
            p = jnp.exp(s - m_new)
            l_ref[g] = alpha * l_ref[g] + jnp.sum(p, axis=-1, keepdims=True)
            acc_ref[g] = alpha * acc_ref[g] + lax.dot_general(
                p.astype(v.dtype), v, (((1,), (0,)), ((), ())),
                preferred_element_type=jnp.float32)
            m_ref[g] = m_new

    @pl.when(below)
    def _unmasked():
        update(masked=False)

    @pl.when(straddle)
    def _masked():
        update(masked=True)

    @pl.when(kj == pl.num_programs(2) - 1)
    def _finalize():
        outs = []
        for g in range(group):
            inv_l = pl.reciprocal(l_ref[g], approx=True)
            outs.append((acc_ref[g] * inv_l).astype(o_ref.dtype))
        o_ref[...] = jnp.concatenate(outs, axis=-1)


def pallas_flash_attention(qkv, *, num_heads, num_kv_heads, head_dim, tq=512, tkv=1024):
    """qkv: [T,(Hq+2*Hkv)*D] bf16 (q scaled+roped, k roped, v raw).  Returns [T, Hq*D]."""
    T = qkv.shape[0]
    D = head_dim
    group = num_heads // num_kv_heads
    tq = _pick_tile(T, tq)
    tkv = _pick_tile(T, tkv)
    kernel = functools.partial(_flash_kernel, group=group, head_dim=D, tq=tq, tkv=tkv)

    # Clamp the kv block index to the causal boundary: the repeated index makes Pallas skip the
    # DMA for tiles that lie entirely above the diagonal (pl.when alone only skips compute).
    def kv_clamp(qi, kj):
        return jnp.minimum(kj, (qi * tq + tq - 1) // tkv)

    return pl.pallas_call(
        kernel,
        out_shape=jax.ShapeDtypeStruct((T, num_heads * D), qkv.dtype),
        grid_spec=pltpu.PrefetchScalarGridSpec(
            num_scalar_prefetch=0,
            # q_tile leading (large parallel axis for megacore), kv tile innermost (reduction).
            grid=(T // tq, num_kv_heads, T // tkv),
            in_specs=[
                # Q: whole GQA group of query-head columns for kv head kh.
                pl.BlockSpec((tq, group * D), lambda qi, kh, kj: (qi, kh)),
                # K / V column blocks of width D inside the fused QKV output.
                pl.BlockSpec((tkv, D),
                             lambda qi, kh, kj: (kv_clamp(qi, kj), num_heads + kh)),
                pl.BlockSpec((tkv, D),
                             lambda qi, kh, kj: (kv_clamp(qi, kj),
                                                 num_heads + num_kv_heads + kh)),
            ],
            out_specs=pl.BlockSpec((tq, group * D), lambda qi, kh, kj: (qi, kh)),
            # NOTE: (group, tq, 1) stats pad the last dim to 128 lanes; VMEM sizing below accounts
            # for it (≈11 MiB total at group=8, tq=512, tkv=1024 -- fits every chip's scoped limit).
            scratch_shapes=[
                pltpu.VMEM((group, tq, 1), jnp.float32),   # running row max
                pltpu.VMEM((group, tq, 1), jnp.float32),   # running softmax denom
                pltpu.VMEM((group, tq, D), jnp.float32),   # output accumulator
            ]),
        compiler_params=pltpu.CompilerParams(
            dimension_semantics=("parallel", "parallel", "arbitrary"),
            vmem_limit_bytes=32 * 1024 * 1024),
    )(qkv, qkv, qkv)


# --------------------------------------- module glue ---------------------------------------

class Qwen3AttentionPallas:
    """JAX/Pallas port of Qwen3Attention.forward (tp_size == 1, causal prefill path)."""

    def __init__(self, hidden_size, num_heads, num_kv_heads, head_dim=None,
                 rms_norm_eps=1e-6, qkv_bias=False, rope_theta=10000.0, key=None):
        self.hidden_size = hidden_size
        self.num_heads = num_heads
        self.num_kv_heads = num_kv_heads
        self.head_dim = head_dim or hidden_size // num_heads
        assert self.head_dim % 128 == 0, "lane-dense layout requires head_dim % 128 == 0"
        assert num_heads % num_kv_heads == 0
        self.q_size = num_heads * self.head_dim
        self.kv_size = num_kv_heads * self.head_dim
        self.scaling = self.head_dim ** -0.5
        self.eps = rms_norm_eps
        self.rope_theta = rope_theta

        key = key if key is not None else jax.random.PRNGKey(0)
        k1, k2 = jax.random.split(key)
        qkv_out = self.q_size + 2 * self.kv_size
        # Deterministic synthetic weights; Qwen3 uses qkv_bias=False so there are no bias terms.
        self.w_qkv = (0.05 * jax.random.normal(k1, (hidden_size, qkv_out),
                                               jnp.float32)).astype(jnp.bfloat16)
        self.w_o = (0.05 * jax.random.normal(k2, (self.q_size, hidden_size),
                                             jnp.float32)).astype(jnp.bfloat16)
        # Flattened per-column norm-weight table [1, (Hq+Hkv)*D]:
        # q columns hold q_norm * softmax_scale (scale folded here, exact since norm/rope are
        # linear), k columns hold k_norm.  RMSNorm weights initialize to ones.
        q_norm_w = jnp.ones((self.head_dim,), jnp.float32)
        k_norm_w = jnp.ones((self.head_dim,), jnp.float32)
        self.norm_w = jnp.concatenate(
            [jnp.tile(q_norm_w * self.scaling, (num_heads,)),
             jnp.tile(k_norm_w, (num_kv_heads,))])[None, :]

    def _rope_tables(self, positions):
        D = self.head_dim
        inv_freq = 1.0 / (self.rope_theta **
                          (jnp.arange(0, D, 2, dtype=jnp.float32) / D))
        freqs = positions.astype(jnp.float32)[:, None] * inv_freq[None, :]   # [T, D/2]
        cos, sin = jnp.cos(freqs), jnp.sin(freqs)
        # Full-width lane-dense tables: rope(x) = x*cos_full + roll(x, D/2)*sin_signed
        cos_full = jnp.concatenate([cos, cos], axis=-1)                      # [T, D]
        sin_signed = jnp.concatenate([-sin, sin], axis=-1)                   # [T, D]
        return cos_full, sin_signed

    def __call__(self, positions, hidden_states):
        T = hidden_states.shape[0]
        # Pad T to a multiple of 128 so every kernel gets lane/sublane-friendly tiles; pad query
        # rows are discarded and pad key rows are excluded by the causal mask (col index >= T).
        T_pad = ((T + 127) // 128) * 128
        pad = T_pad - T
        x = hidden_states.astype(jnp.bfloat16)
        pos = positions
        if pad:
            x = jnp.pad(x, ((0, pad), (0, 0)))
            pos = jnp.pad(positions, (0, pad))

        cos_full, sin_signed = self._rope_tables(pos)
        # 1) fused QKV projection + per-head RMSNorm + RoPE (+scale) -> [T_pad, (Hq+2*Hkv)*D] bf16
        qkv = pallas_qkv_norm_rope(x, self.w_qkv, self.norm_w, cos_full, sin_signed,
                                   num_heads=self.num_heads,
                                   num_kv_heads=self.num_kv_heads,
                                   head_dim=self.head_dim, eps=self.eps)
        # 2) causal flash attention (online softmax, DMA-skipped causal tiles, GQA K/V reuse)
        # TODO(synk): vLLM's Attention also covers the paged-KV-cache decode path; only the
        # causal prefill path is implemented here.
        o = pallas_flash_attention(qkv, num_heads=self.num_heads,
                                   num_kv_heads=self.num_kv_heads,
                                   head_dim=self.head_dim)
        # 3) output projection -> [T_pad, hidden], then drop padding.
        out = pallas_matmul(o, self.w_o, out_dtype=hidden_states.dtype)
        return out[:T] if pad else out


# ------------------------------------ pure-jnp reference ------------------------------------

def reference_forward(attn, positions, hidden_states):
    """Pure-jnp reference with the same bf16 cast points as the Pallas path."""
    f32, bf16 = jnp.float32, jnp.bfloat16
    hi = jax.lax.Precision.HIGHEST
    Hq, Hkv, D = attn.num_heads, attn.num_kv_heads, attn.head_dim
    T = hidden_states.shape[0]
    x = hidden_states.astype(bf16).astype(f32)
    qkv = jnp.dot(x, attn.w_qkv.astype(f32), precision=hi)
    q = qkv[:, :Hq * D].reshape(T, Hq, D)
    k = qkv[:, Hq * D:(Hq + Hkv) * D].reshape(T, Hkv, D)
    v = qkv[:, (Hq + Hkv) * D:].astype(bf16).astype(f32).reshape(T, Hkv, D)

    def rmsnorm(t):
        var = jnp.mean(t * t, axis=-1, keepdims=True)
        return t * jax.lax.rsqrt(var + attn.eps)   # norm weights are ones

    q, k = rmsnorm(q), rmsnorm(k)
    inv_freq = 1.0 / (attn.rope_theta ** (jnp.arange(0, D, 2, dtype=f32) / D))
    fr = positions.astype(f32)[:, None] * inv_freq[None, :]
    cos = jnp.concatenate([jnp.cos(fr)] * 2, axis=-1)[:, None, :]
    sin = jnp.concatenate([jnp.sin(fr)] * 2, axis=-1)[:, None, :]

    def rope(t):
        rot = jnp.concatenate([-t[..., D // 2:], t[..., :D // 2]], axis=-1)
        return t * cos + rot * sin

    q = (rope(q) * attn.scaling).astype(bf16).astype(f32)
    k = rope(k).astype(bf16).astype(f32)
    group = Hq // Hkv
    k_e = jnp.repeat(k, group, axis=1)
    v_e = jnp.repeat(v, group, axis=1)
    s = jnp.einsum("thd,shd->hts", q, k_e, precision=hi)
    mask = jnp.tril(jnp.ones((T, T), bool))
    s = jnp.where(mask[None], s, -jnp.inf)
    p = jax.nn.softmax(s, axis=-1).astype(bf16).astype(f32)
    o = jnp.einsum("hts,shd->thd", p, v_e, precision=hi)
    o = o.astype(bf16).astype(f32).reshape(T, Hq * D)
    return jnp.dot(o, attn.w_o.astype(f32), precision=hi).astype(hidden_states.dtype)


if __name__ == "__main__":
    # Small shapes consistent with the module: seq=8, hidden=512, heads=4, kv_heads=2
    # (head_dim = 128, the real Qwen3 head size, so blocks stay lane-dense).
    T, HIDDEN, N_HEADS, N_KV = 8, 512, 4, 2
    root = jax.random.PRNGKey(0)
    k_w, k_x = jax.random.split(root)

    attn = Qwen3AttentionPallas(hidden_size=HIDDEN, num_heads=N_HEADS,
                                num_kv_heads=N_KV, key=k_w)

    positions = jnp.arange(T, dtype=jnp.int32)
    hidden_states = jax.random.normal(k_x, (T, HIDDEN), jnp.float32)

    out = attn(positions, hidden_states)
    jax.block_until_ready(out)
    assert out.shape == (T, HIDDEN) and out.dtype == jnp.float32
    assert bool(jnp.isfinite(out).all())

    # Tolerance covers bf16 intermediates + the approximate softmax reciprocal.
    ref = reference_forward(attn, positions, hidden_states)
    max_err = float(jnp.max(jnp.abs(out - ref)))
    assert bool(jnp.allclose(out, ref, rtol=5e-2, atol=5e-2)), f"max_err={max_err}"
    print("KERNEL_OK")
</pallas_src>

<mosaic_0001>
module attributes {stable_mosaic.version = 11 : i64} {
  func.func @_qkv_norm_rope_kernel(%arg0: i32, %arg1: i32, %arg2: i32, %arg3: memref<128x512xbf16, #tpu.memory_space<vmem>>, %arg4: memref<512x256xbf16, #tpu.memory_space<vmem>>, %arg5: memref<1x256xf32, #tpu.memory_space<vmem>>, %arg6: memref<128x128xf32, #tpu.memory_space<vmem>>, %arg7: memref<128x128xf32, #tpu.memory_space<vmem>>, %arg8: memref<128x256xbf16, #tpu.memory_space<vmem>>, %arg9: memref<128x256xf32, #tpu.memory_space<vmem>>) attributes {dimension_semantics = [#tpu.dimension_semantics<parallel>, #tpu.dimension_semantics<parallel>, #tpu.dimension_semantics<arbitrary>], iteration_bounds = array<i64: 1, 4, 1>, scalar_prefetch = 0 : i64, scratch_operands = 1 : i64, tpu.core_type = #tpu.core_type<tc>, window_params = [{transform_indices = @transform_0, window_bounds = array<i64: 128, 512>}, {transform_indices = @transform_1, window_bounds = array<i64: 512, 256>}, {transform_indices = @transform_2, window_bounds = array<i64: 1, 256>}, {transform_indices = @transform_3, window_bounds = array<i64: 128, 128>}, {transform_indices = @transform_4, window_bounds = array<i64: 128, 128>}, {transform_indices = @transform_5, window_bounds = array<i64: 128, 256>}]} {
    %c0_i32 = arith.constant 0 : i32
    %0 = arith.cmpi eq, %arg2, %c0_i32 : i32
    %1 = arith.extui %0 : i1 to i32
    %c0_i32_0 = arith.constant 0 : i32
    %2 = arith.cmpi ne, %1, %c0_i32_0 : i32
    scf.if %2 {
      %cst_10 = arith.constant 0.000000e+00 : f32
      %12 = vector.broadcast %cst_10 : f32 to vector<128x256xf32>
      %c0_11 = arith.constant 0 : index
      %c0_12 = arith.constant 0 : index
      %13 = vector.load %arg9[%c0_11, %c0_12] : memref<128x256xf32, #tpu.memory_space<vmem>>, vector<128x256xf32>
      tpu.vector_store %arg9[%c0_11, %c0_12], %12 {strides = array<i32>} : memref<128x256xf32, #tpu.memory_space<vmem>>, vector<128x256xf32>,
    } else {
    }
    %c0 = arith.constant 0 : index
    %c0_1 = arith.constant 0 : index
    %3 = vector.load %arg9[%c0, %c0_1] : memref<128x256xf32, #tpu.memory_space<vmem>>, vector<128x256xf32>
    %c0_2 = arith.constant 0 : index
    %c0_3 = arith.constant 0 : index
    %4 = vector.load %arg3[%c0_2, %c0_3] : memref<128x512xbf16, #tpu.memory_space<vmem>>, vector<128x512xbf16>
    %c0_4 = arith.constant 0 : index
    %c0_5 = arith.constant 0 : index
    %5 = vector.load %arg4[%c0_4, %c0_5] : memref<512x256xbf16, #tpu.memory_space<vmem>>, vector<512x256xbf16>
    %cst = arith.constant dense<0.000000e+00> : vector<128x256xf32>
    %6 = tpu.matmul %4, %5, %cst {dimension_numbers = #tpu.dot_dimension_numbers<[1], [0], [0], [1], [0, 0, 1, 1], [], []>} : vector<128x512xbf16>, vector<512x256xbf16>, vector<128x256xf32> -> vector<128x256xf32>
    %7 = arith.addf %3, %6 : vector<128x256xf32>
    %c0_6 = arith.constant 0 : index
    %c0_7 = arith.constant 0 : index
    %8 = vector.load %arg9[%c0_6, %c0_7] : memref<128x256xf32, #tpu.memory_space<vmem>>, vector<128x256xf32>
    tpu.vector_store %arg9[%c0_6, %c0_7], %7 {strides = array<i32>} : memref<128x256xf32, #tpu.memory_space<vmem>>, vector<128x256xf32>,
    %c0_i32_8 = arith.constant 0 : i32
    %9 = arith.cmpi eq, %arg2, %c0_i32_8 : i32
    %10 = arith.extui %9 : i1 to i32
    %c0_i32_9 = arith.constant 0 : i32
    %11 = arith.cmpi ne, %10, %c0_i32_9 : i32
    scf.if %11 {
      %c3_i32 = arith.constant 3 : i32
      %12 = arith.cmpi slt, %arg1, %c3_i32 : i32
      %13 = arith.extui %12 : i1 to i32
      %c0_i32_10 = arith.constant 0 : i32
      %14 = arith.cmpi ne, %13, %c0_i32_10 : i32
      scf.if %14 {
        %c0_13 = arith.constant 0 : index
        %c0_14 = arith.constant 0 : index
        %18 = vector.load %arg9[%c0_13, %c0_14] : memref<128x256xf32, #tpu.memory_space<vmem>>, vector<128x256xf32>
        %c0_15 = arith.constant 0 : index
        %c0_16 = arith.constant 0 : index
        %19 = vector.load %arg6[%c0_15, %c0_16] : memref<128x128xf32, #tpu.memory_space<vmem>>, vector<128x128xf32>
        %c0_17 = arith.constant 0 : index
        %c0_18 = arith.constant 0 : index
        %20 = vector.load %arg7[%c0_17, %c0_18] : memref<128x128xf32, #tpu.memory_space<vmem>>, vector<128x128xf32>
        %21 = vector.extract_strided_slice %18 {offsets = [0, 0], sizes = [128, 128], strides = [1, 1]} : vector<128x256xf32> to vector<128x128xf32>
        %c0_19 = arith.constant 0 : index
        %c0_20 = arith.constant 0 : index
        %22 = vector.load %arg5[%c0_19, %c0_20] : memref<1x256xf32, #tpu.memory_space<vmem>>, vector<1x128xf32>
        %23 = arith.mulf %21, %21 : vector<128x128xf32>
        %cst_21 = arith.constant dense<0.000000e+00> : vector<128xf32>
        %24 = vector.multi_reduction <add>, %23, %cst_21 [1] : vector<128x128xf32> to vector<128xf32>
        %25 = vector.shape_cast %24 : vector<128xf32> to vector<128x1xf32>
        %cst_22 = arith.constant 1.280000e+02 : f32
        %26 = vector.broadcast %cst_22 : f32 to vector<128x1xf32>
        %27 = arith.divf %25, %26 : vector<128x1xf32>
        %cst_23 = arith.constant 9.99999997E-7 : f32
        %28 = vector.broadcast %cst_23 : f32 to vector<128x1xf32>
        %29 = arith.addf %27, %28 : vector<128x1xf32>
        %30 = math.rsqrt %29 : vector<128x1xf32>
        %31 = vector.broadcast %30 : vector<128x1xf32> to vector<128x128xf32>
        %32 = arith.mulf %21, %31 : vector<128x128xf32>
        %33 = vector.broadcast %22 : vector<1x128xf32> to vector<128x128xf32>
        %34 = arith.mulf %32, %33 : vector<128x128xf32>
        %c64_i32 = arith.constant 64 : i32
        %35 = tpu.dynamic_rotate %34 by %c64_i32 dim 1 : vector<128x128xf32>, i32 -> vector<128x128xf32>
        %36 = arith.mulf %34, %19 : vector<128x128xf32>
        %37 = arith.mulf %35, %20 : vector<128x128xf32>
        %38 = arith.addf %36, %37 : vector<128x128xf32>
        %39 = vector.extract_strided_slice %18 {offsets = [0, 128], sizes = [128, 128], strides = [1, 1]} : vector<128x256xf32> to vector<128x128xf32>
        %c0_24 = arith.constant 0 : index
        %c128 = arith.constant 128 : index
        %40 = vector.load %arg5[%c0_24, %c128] : memref<1x256xf32, #tpu.memory_space<vmem>>, vector<1x128xf32>
        %41 = arith.mulf %39, %39 : vector<128x128xf32>
        %cst_25 = arith.constant dense<0.000000e+00> : vector<128xf32>
        %42 = vector.multi_reduction <add>, %41, %cst_25 [1] : vector<128x128xf32> to vector<128xf32>
        %43 = vector.shape_cast %42 : vector<128xf32> to vector<128x1xf32>
        %cst_26 = arith.constant 1.280000e+02 : f32
        %44 = vector.broadcast %cst_26 : f32 to vector<128x1xf32>
        %45 = arith.divf %43, %44 : vector<128x1xf32>
        %cst_27 = arith.constant 9.99999997E-7 : f32
        %46 = vector.broadcast %cst_27 : f32 to vector<128x1xf32>
        %47 = arith.addf %45, %46 : vector<128x1xf32>
        %48 = math.rsqrt %47 : vector<128x1xf32>
        %49 = vector.broadcast %48 : vector<128x1xf32> to vector<128x128xf32>
        %50 = arith.mulf %39, %49 : vector<128x128xf32>
        %51 = vector.broadcast %40 : vector<1x128xf32> to vector<128x128xf32>
        %52 = arith.mulf %50, %51 : vector<128x128xf32>
        %c64_i32_28 = arith.constant 64 : i32
        %53 = tpu.dynamic_rotate %52 by %c64_i32_28 dim 1 : vector<128x128xf32>, i32 -> vector<128x128xf32>
        %54 = arith.mulf %52, %19 : vector<128x128xf32>
        %55 = arith.mulf %53, %20 : vector<128x128xf32>
        %56 = arith.addf %54, %55 : vector<128x128xf32>
        %57 = tpu.concatenate %38, %56 in 1 : vector<128x128xf32>, vector<128x128xf32> -> vector<128x256xf32>
        %58 = arith.truncf %57 : vector<128x256xf32> to vector<128x256xbf16>
        %c0_29 = arith.constant 0 : index
        %c0_30 = arith.constant 0 : index
        %59 = vector.load %arg8[%c0_29, %c0_30] : memref<128x256xbf16, #tpu.memory_space<vmem>>, vector<128x256xbf16>
        tpu.vector_store %arg8[%c0_29, %c0_30], %58 {strides = array<i32>} : memref<128x256xbf16, #tpu.memory_space<vmem>>, vector<128x256xbf16>,
      } else {
      }
      %c3_i32_11 = arith.constant 3 : i32
      %15 = arith.cmpi sge, %arg1, %c3_i32_11 : i32
      %16 = arith.extui %15 : i1 to i32
      %c0_i32_12 = arith.constant 0 : i32
      %17 = arith.cmpi ne, %16, %c0_i32_12 : i32
      scf.if %17 {
        %c0_13 = arith.constant 0 : index
        %c0_14 = arith.constant 0 : index
        %18 = vector.load %arg9[%c0_13, %c0_14] : memref<128x256xf32, #tpu.memory_space<vmem>>, vector<128x256xf32>
        %19 = arith.truncf %18 : vector<128x256xf32> to vector<128x256xbf16>
        %c0_15 = arith.constant 0 : index
        %c0_16 = arith.constant 0 : index
        %20 = vector.load %arg8[%c0_15, %c0_16] : memref<128x256xbf16, #tpu.memory_space<vmem>>, vector<128x256xbf16>
        tpu.vector_store %arg8[%c0_15, %c0_16], %19 {strides = array<i32>} : memref<128x256xbf16, #tpu.memory_space<vmem>>, vector<128x256xbf16>,
      } else {
      }
    } else {
    }
    return
  }
  func.func @transform_0(%arg0: i32, %arg1: i32, %arg2: i32) -> (i32, i32) {
    %c0_i32 = arith.constant 0 : i32
    return %arg0, %arg2 : i32, i32
  }
  func.func @transform_1(%arg0: i32, %arg1: i32, %arg2: i32) -> (i32, i32) {
    %c0_i32 = arith.constant 0 : i32
    return %arg2, %arg1 : i32, i32
  }
  func.func @transform_2(%arg0: i32, %arg1: i32, %arg2: i32) -> (i32, i32) {
    %c2_i32 = arith.constant 2 : i32
    %0 = arith.minsi %arg1, %c2_i32 : i32
    %c0_i32 = arith.constant 0 : i32
    %c0_i32_0 = arith.constant 0 : i32
    return %c0_i32, %0 : i32, i32
  }
  func.func @transform_3(%arg0: i32, %arg1: i32, %arg2: i32) -> (i32, i32) {
    %c0_i32 = arith.constant 0 : i32
    %c0_i32_0 = arith.constant 0 : i32
    return %arg0, %c0_i32 : i32, i32
  }
  func.func @transform_4(%arg0: i32, %arg1: i32, %arg2: i32) -> (i32, i32) {
    %c0_i32 = arith.constant 0 : i32
    %c0_i32_0 = arith.constant 0 : i32
    return %arg0, %c0_i32 : i32, i32
  }
  func.func @transform_5(%arg0: i32, %arg1: i32, %arg2: i32) -> (i32, i32) {
    %c0_i32 = arith.constant 0 : i32
    return %arg0, %arg1 : i32, i32
  }
}

</mosaic_0001>

<llo_original>
// kernel: tpu_custom_call.1
$region0: #{tpu_custom_call.1}
  #allocation0 [shape = 'u32[]', space=smem, size = 0x4, offset = 0x4, fixed_abs, tag = 'smem constant byte address 0x4 - core index']
  #allocation1 [shape = 'u32[72,128]{1,0:T(1,128)}', space=vmem, size = 0x9000, scoped, tag = 'internal scratch']
  #allocation2 [shape = 'f32[128,256]{1,0:T(8,128)}', space=vmem, size = 0x20000, scoped, tag = 'scratch operand']
  %s0 = inlined_call_operand.hbm [shape: bf16[128,512], index: 0, kind: input, shape index: {}]
  %s1 = inlined_call_operand.hbm [shape: bf16[512,1024], index: 1, kind: input, shape index: {}]
  %s2 = inlined_call_operand.hbm [shape: f32[1,768], index: 2, kind: input, shape index: {}]
  %s3 = inlined_call_operand.hbm [shape: f32[128,128], index: 3, kind: input, shape index: {}]
  %s4 = inlined_call_operand.hbm [shape: f32[128,128], index: 4, kind: input, shape index: {}]
  %s5 = inlined_call_operand.hbm [shape: bf16[128,1024], index: 5, kind: output, shape index: {}]
  %s6 = sld [smem:[#allocation0]]
  $region89: #{tpu_custom_call.1} parent=0
    _
  %s8 = ssub.s32 1, %s6
  %s9 = scalar_select 0, %s8, %s6
  $region1: #{tpu_custom_call.1} parent=0
    #allocation3 [shape = 'u8[131072]{0}', space=vmem, size = 0x20000, scoped, tag = 'input window, operand 0, single buffered']
    #allocation4 [shape = 's32[2]{0}', space=sflag, size = 0x8, scoped, tag = 'scoped memory for tpu_custom_call.1']
    #allocation5 [shape = 's32[2]{0}', space=sflag, size = 0x8, scoped, tag = 'scoped memory for tpu_custom_call.1']
    #allocation6 [shape = 'u8[524288]{0}', space=vmem, size = 0x80000, scoped, tag = 'input window, operand 1']
    #allocation7 [shape = 's32[2]{0}', space=sflag, size = 0x8, scoped, tag = 'scoped memory for tpu_custom_call.1']
    #allocation8 [shape = 'u8[2048]{0}', space=vmem, size = 0x800, scoped, tag = 'input window, operand 2']
    #allocation9 [shape = 'u8[65536]{0}', space=vmem, size = 0x10000, scoped, tag = 'input window, operand 3, single buffered']
    #allocation10 [shape = 's32[1]{0}', space=sflag, size = 0x4, scoped, tag = 'scoped memory for tpu_custom_call.1']
    #allocation11 [shape = 'u8[65536]{0}', space=vmem, size = 0x10000, scoped, tag = 'input window, operand 4, single buffered']
    #allocation12 [shape = 'u8[131072]{0}', space=vmem, size = 0x20000, scoped, tag = 'output window, operand 0']
    %10 = vsyncpa [#allocation4], 0
    %11 = vsyncpa [#allocation7], 0
    %s12 = scalar_lea.sflag [#allocation7], 1
    %13 = vsyncpa %s12, 0
    %14 = vsyncpa [#allocation10], 0
    %15 = vsyncpa [#allocation5], 0
    %s16 = scalar_lea.sflag [#allocation5], 1
    %17 = vsyncpa %s16, 0
    loop: start=0, step=1, limit=6
    $region2: #{tpu_custom_call.1} parent=1 // loop_pre_header
      _
    $region3: #{tpu_custom_call.1} parent=1 // loop_header
      %s19 = sphi 0, %s23
      %p20 = scmp.ge.s32.totalorder %s19, 6
      %s26 = sphi 0, %s45
      %s27 = sphi 0, %s41
      %s28 = sphi 0, %s37
      %s29 = sphi 0, %s26
      %s30 = sphi 0, %s27
      %s31 = sphi 0, %s28
      %s32 = sphi 0, %s29
      %s33 = sphi 0, %s30
      %s34 = sphi 0, %s31
      %s50 = sphi 0, %s52
      %s53 = sphi 0, %s50
      %s54 = sphi 0, %s53
      %s70 = sphi 0, %s54
      %s78 = sphi 0, %s80
      %s81 = sphi 0, %s78
      %s82 = sphi 0, %s81
      %s98 = sphi 0, %s82
      %s108 = sphi 0, %s110
      %s111 = sphi 0, %s108
      %s112 = sphi 0, %s111
      %s128 = sphi 0, %s112
      %s134 = sphi 0, %s136
      %s137 = sphi 0, %s134
      %s138 = sphi 0, %s137
      %s154 = sphi 0, %s138
      %s160 = sphi 0, %s162
      %s163 = sphi 0, %s160
      %s164 = sphi 0, %s163
      %s180 = sphi 0, %s164
      %s188 = sphi 0, %s190
      %s191 = sphi 0, %s188
      %s192 = sphi 0, %s191
      %s208 = sphi 0, %s192
    $region4: #{tpu_custom_call.1} parent=1 // loop_header_branch
      %22 = sbr.rel (%p20) target = $region8
    $region5: #{tpu_custom_call.1} parent=1 // loop_body
      %s24 = ssub.s32 %s19, 1
      %s25 = ssub.s32 %s19, 2
      %s35 = sadd.s32 1, %s28
      %p36 = scmp.ge.s32.totalorder %s35, 1
      %s37 = scalar_select %p36, 0, %s35
      %s38 = sadd.s32 1, %s27
      %s39 = scalar_select %p36, %s38, %s27
      %p40 = scmp.ge.s32.totalorder %s39, 4
      %s41 = scalar_select %p40, 0, %s39
      %s42 = sadd.s32 1, %s26
      %s43 = scalar_select %p40, %s42, %s26
      %p44 = scmp.ge.s32.totalorder %s43, 1
      %s45 = scalar_select %p44, 0, %s43
      %s46 = ssub.s32 %s26, %s45
      %s47 = ssub.s32 %s28, %s37
      %s48 = sor.u32 %s46, %s47
      %p49 = scmp.eq.s32.totalorder %s48, 0
      %s51 = sadd.s32 %s50, 1
      %s52 = scalar_select %p49, %s50, %s51
      %p55 = pneg %p49
      %p56 = scmp.eq.s32.totalorder %s19, 3
      %p57 = por %p55, %p56
      %p58 = scmp.ne.s32.totalorder %s50, %s53
      %p59 = scmp.eq.s32.totalorder %s19, 0
      %p60 = por %p58, %p59
      %p61 = scmp.ne.s32.totalorder %s50, %s53
      %p62 = scmp.eq.s32.totalorder %s24, 3
      %p63 = por %p61, %p62
      %p64 = scmp.ne.s32.totalorder %s53, %s54
      %p65 = scmp.eq.s32.totalorder %s24, 0
      %p66 = por %p64, %p65
      %p67 = scmp.ne.s32.totalorder %s53, %s54
      %p68 = scmp.eq.s32.totalorder %s25, 3
      %p69 = por %p67, %p68
      %p71 = scmp.ne.s32.totalorder %s54, %s70
      %p72 = scmp.eq.s32.totalorder %s25, 0
      %p73 = por %p71, %p72
      %s74 = ssub.s32 %s28, %s37
      %s75 = ssub.s32 %s27, %s41
      %s76 = sor.u32 %s74, %s75
      %p77 = scmp.eq.s32.totalorder %s76, 0
      %s79 = sadd.s32 %s78, 1
      %s80 = scalar_select %p77, %s78, %s79
      %p83 = pneg %p77
      %p84 = scmp.eq.s32.totalorder %s19, 3
      %p85 = por %p83, %p84
      %p86 = scmp.ne.s32.totalorder %s78, %s81
      %p87 = scmp.eq.s32.totalorder %s19, 0
      %p88 = por %p86, %p87
      %p89 = scmp.ne.s32.totalorder %s78, %s81
      %p90 = scmp.eq.s32.totalorder %s24, 3
      %p91 = por %p89, %p90
      %p92 = scmp.ne.s32.totalorder %s81, %s82
      %p93 = scmp.eq.s32.totalorder %s24, 0
      %p94 = por %p92, %p93
      %p95 = scmp.ne.s32.totalorder %s81, %s82
      %p96 = scmp.eq.s32.totalorder %s25, 3
      %p97 = por %p95, %p96
      %p99 = scmp.ne.s32.totalorder %s82, %s98
      %p100 = scmp.eq.s32.totalorder %s25, 0
      %p101 = por %p99, %p100
      %p102 = scmp.lt.s32.totalorder %s27, 2
      %s103 = scalar_select %p102, %s27, 2
      %p104 = scmp.lt.s32.totalorder %s41, 2
      %s105 = scalar_select %p104, %s41, 2
      %s106 = ssub.s32 %s103, %s105
      %p107 = scmp.eq.s32.totalorder %s106, 0
      %s109 = sadd.s32 %s108, 1
      %s110 = scalar_select %p107, %s108, %s109
      %p113 = pneg %p107
      %p114 = scmp.eq.s32.totalorder %s19, 3
      %p115 = por %p113, %p114
      %p116 = scmp.ne.s32.totalorder %s108, %s111
      %p117 = scmp.eq.s32.totalorder %s19, 0
      %p118 = por %p116, %p117
      %p119 = scmp.ne.s32.totalorder %s108, %s111
      %p120 = scmp.eq.s32.totalorder %s24, 3
      %p121 = por %p119, %p120
      %p122 = scmp.ne.s32.totalorder %s111, %s112
      %p123 = scmp.eq.s32.totalorder %s24, 0
      %p124 = por %p122, %p123
      %p125 = scmp.ne.s32.totalorder %s111, %s112
      %p126 = scmp.eq.s32.totalorder %s25, 3
      %p127 = por %p125, %p126
      %p129 = scmp.ne.s32.totalorder %s112, %s128
      %p130 = scmp.eq.s32.totalorder %s25, 0
      %p131 = por %p129, %p130
      %s132 = ssub.s32 %s26, %s45
      %p133 = scmp.eq.s32.totalorder %s132, 0
      %s135 = sadd.s32 %s134, 1
      %s136 = scalar_select %p133, %s134, %s135
      %p139 = pneg %p133
      %p140 = scmp.eq.s32.totalorder %s19, 3
      %p141 = por %p139, %p140
      %p142 = scmp.ne.s32.totalorder %s134, %s137
      %p143 = scmp.eq.s32.totalorder %s19, 0
      %p144 = por %p142, %p143
      %p145 = scmp.ne.s32.totalorder %s134, %s137
      %p146 = scmp.eq.s32.totalorder %s24, 3
      %p147 = por %p145, %p146
      %p148 = scmp.ne.s32.totalorder %s137, %s138
      %p149 = scmp.eq.s32.totalorder %s24, 0
      %p150 = por %p148, %p149
      %p151 = scmp.ne.s32.totalorder %s137, %s138
      %p152 = scmp.eq.s32.totalorder %s25, 3
      %p153 = por %p151, %p152
      %p155 = scmp.ne.s32.totalorder %s138, %s154
      %p156 = scmp.eq.s32.totalorder %s25, 0
      %p157 = por %p155, %p156
      %s158 = ssub.s32 %s26, %s45
      %p159 = scmp.eq.s32.totalorder %s158, 0
      %s161 = sadd.s32 %s160, 1
      %s162 = scalar_select %p159, %s160, %s161
      %p165 = pneg %p159
      %p166 = scmp.eq.s32.totalorder %s19, 3
      %p167 = por %p165, %p166
      %p168 = scmp.ne.s32.totalorder %s160, %s163
      %p169 = scmp.eq.s32.totalorder %s19, 0
      %p170 = por %p168, %p169
      %p171 = scmp.ne.s32.totalorder %s160, %s163
      %p172 = scmp.eq.s32.totalorder %s24, 3
      %p173 = por %p171, %p172
      %p174 = scmp.ne.s32.totalorder %s163, %s164
      %p175 = scmp.eq.s32.totalorder %s24, 0
      %p176 = por %p174, %p175
      %p177 = scmp.ne.s32.totalorder %s163, %s164
      %p178 = scmp.eq.s32.totalorder %s25, 3
      %p179 = por %p177, %p178
      %p181 = scmp.ne.s32.totalorder %s164, %s180
      %p182 = scmp.eq.s32.totalorder %s25, 0
      %p183 = por %p181, %p182
      %s184 = ssub.s32 %s26, %s45
      %s185 = ssub.s32 %s27, %s41
      %s186 = sor.u32 %s184, %s185
      %p187 = scmp.eq.s32.totalorder %s186, 0
      %s189 = sadd.s32 %s188, 1
      %s190 = scalar_select %p187, %s188, %s189
      %p193 = pneg %p187
      %p194 = scmp.eq.s32.totalorder %s19, 3
      %p195 = por %p193, %p194
      %p196 = scmp.ne.s32.totalorder %s188, %s191
      %p197 = scmp.eq.s32.totalorder %s19, 0
      %p198 = por %p196, %p197
      %p199 = scmp.ne.s32.totalorder %s188, %s191
      %p200 = scmp.eq.s32.totalorder %s24, 3
      %p201 = por %p199, %p200
      %p202 = scmp.ne.s32.totalorder %s191, %s192
      %p203 = scmp.eq.s32.totalorder %s24, 0
      %p204 = por %p202, %p203
      %p205 = scmp.ne.s32.totalorder %s191, %s192
      %p206 = scmp.eq.s32.totalorder %s25, 3
      %p207 = por %p205, %p206
      %p209 = scmp.ne.s32.totalorder %s192, %s208
      %p210 = scmp.eq.s32.totalorder %s25, 0
      %p211 = por %p209, %p210
      %p212 = scmp.le.s32.totalorder 1, %s19
      %p213 = scmp.lt.s32.totalorder %s19, 5
      %p214 = pnand %p212, %p213
      %p215 = pneg %p214
      // Predicated region
      $region9: #{tpu_custom_call.1} parent=5 // pred_check
        _
      $region10: #{tpu_custom_call.1} parent=5 // pred_check_branch
        %217 = sbr.rel (%p214) target = $region12
      $region11: #{tpu_custom_call.1} parent=5 // pred_region
        %s218 = ssub.s32 %s19, 1
        // Predicated region
        $region13: #{tpu_custom_call.1} parent=11 // pred_check
          %p219 = pneg %p66
        $region14: #{tpu_custom_call.1} parent=11 // pred_check_branch
          %221 = sbr.rel (%p219) target = $region16
        $region15: #{tpu_custom_call.1} parent=11 // pred_region
          %s222 = smul.u32 16, %s29
          %s223 = smul.u32 4, %s31
          %225 = vsyncadd [#allocation4], 0
          %s226 = smul.addr %s222, 4
          %s227 = sadd.s32 %s223, %s226
          %s228 = smul.addr %s227, 4
          %s229 = scalar_lea.hbm %s0, %s228
          %s230 = sshll.u32 %s229, 4
          %s231 = int_to_ptr.hbm [resolvable:$true] %s230
          %s232 = sshll.u32 [#allocation3], 4
          %s233 = int_to_ptr.vmem [resolvable:$true] %s232
          %238 = dma.hbm_to_vmem [thread:$0]  %s231, 4096, %s233, [#allocation4], 256, 256, 16
        $region16: #{tpu_custom_call.1} parent=11 // pred_fallthru
          _
        // Predicated region
        $region17: #{tpu_custom_call.1} parent=11 // pred_check
          %p239 = pneg %p150
        $region18: #{tpu_custom_call.1} parent=11 // pred_check_branch
          %241 = sbr.rel (%p239) target = $region20
        $region19: #{tpu_custom_call.1} parent=11 // pred_region
          %s242 = smul.u32 16, %s29
          %244 = vsyncadd [#allocation10], 0
          %s245 = smul.addr %s242, 8
          %s246 = scalar_lea.hbm %s3, %s245
          %s247 = sshll.u32 %s246, 4
          %s248 = int_to_ptr.hbm [resolvable:$true] %s247
          %s249 = sshll.u32 [#allocation9], 4
          %s250 = int_to_ptr.vmem [resolvable:$true] %s249
          %255 = dma.hbm_to_vmem [thread:$0]  %s248, 2048, %s250, [#allocation10], 128, 128, 8
        $region20: #{tpu_custom_call.1} parent=11 // pred_fallthru
          _
        // Predicated region
        $region21: #{tpu_custom_call.1} parent=11 // pred_check
          %p256 = pneg %p176
        $region22: #{tpu_custom_call.1} parent=11 // pred_check_branch
          %258 = sbr.rel (%p256) target = $region24
        $region23: #{tpu_custom_call.1} parent=11 // pred_region
          %s259 = smul.u32 16, %s29
          %261 = vsyncadd [#allocation10], 0
          %s262 = smul.addr %s259, 8
          %s263 = scalar_lea.hbm %s4, %s262
          %s264 = sshll.u32 %s263, 4
          %s265 = int_to_ptr.hbm [resolvable:$true] %s264
          %s266 = sshll.u32 [#allocation11], 4
          %s267 = int_to_ptr.vmem [resolvable:$true] %s266
          %272 = dma.hbm_to_vmem [thread:$0]  %s265, 2048, %s267, [#allocation10], 128, 128, 8
        $region24: #{tpu_custom_call.1} parent=11 // pred_fallthru
          _
      $region12: #{tpu_custom_call.1} parent=5 // pred_fallthru
        _
      %p273 = scmp.lt.s32.totalorder %s19, 4
      // Predicated region
      $region25: #{tpu_custom_call.1} parent=5 // pred_check
        %p274 = pneg %p273
      $region26: #{tpu_custom_call.1} parent=5 // pred_check_branch
        %276 = sbr.rel (%p274) target = $region28
      $region27: #{tpu_custom_call.1} parent=5 // pred_region
        // Predicated region
        $region29: #{tpu_custom_call.1} parent=27 // pred_check
          %p277 = pneg %p88
        $region30: #{tpu_custom_call.1} parent=27 // pred_check_branch
          %279 = sbr.rel (%p277) target = $region32
        $region31: #{tpu_custom_call.1} parent=27 // pred_region
          %s280 = sand.u32 %s19, 1
          %s281 = scalar_lea.sflag [#allocation7], %s280
          %s282 = sand.u32 %s78, 1
          %s283 = smul.addr %s282, 512
          %s284 = scalar_lea.vmem [#allocation6], %s283
          %s285 = smul.u32 64, %s28
          %s286 = smul.u32 2, %s27
          %288 = vsyncadd %s281, 0
          %s289 = smul.addr %s285, 8
          %s290 = sadd.s32 %s286, %s289
          %s291 = smul.addr %s290, 4
          %s292 = scalar_lea.hbm %s1, %s291
          %s293 = sshll.u32 %s292, 4
          %s294 = int_to_ptr.hbm [resolvable:$true] %s293
          %s295 = sshll.u32 %s284, 4
          %s296 = int_to_ptr.vmem [resolvable:$true] %s295
          %301 = dma.hbm_to_vmem [thread:$0]  %s294, 8192, %s296, %s281, 512, 128, 8
        $region32: #{tpu_custom_call.1} parent=27 // pred_fallthru
          _
        // Predicated region
        $region33: #{tpu_custom_call.1} parent=27 // pred_check
          %p302 = pneg %p118
        $region34: #{tpu_custom_call.1} parent=27 // pred_check_branch
          %304 = sbr.rel (%p302) target = $region36
        $region35: #{tpu_custom_call.1} parent=27 // pred_region
          %s305 = sand.u32 %s19, 1
          %s306 = scalar_lea.sflag [#allocation7], %s305
          %s307 = sand.u32 %s108, 1
          %s308 = smul.addr %s307, 2
          %s309 = scalar_lea.vmem [#allocation8], %s308
          %p310 = scmp.lt.s32.totalorder %s27, 2
          %s311 = scalar_select %p310, %s27, 2
          %s312 = smul.u32 2, %s311
          %314 = vsyncadd %s306, 0
          %s315 = scalar_lea.hbm %s2, %s312
          %s317 = sshll.u32 %s315, 4
          %s318 = int_to_ptr.hbm [resolvable:$true] %s317
          %s319 = sshll.u32 %s309, 4
          %s320 = int_to_ptr.vmem [resolvable:$true] %s319
          %322 = dma.hbm_to_vmem [thread:$0]  %s318, 32, %s320, %s306
        $region36: #{tpu_custom_call.1} parent=27 // pred_fallthru
          _
      $region28: #{tpu_custom_call.1} parent=5 // pred_fallthru
        _
      %p323 = scmp.le.s32.totalorder 1, %s19
      %p324 = scmp.lt.s32.totalorder %s19, 5
      %p325 = pnand %p323, %p324
      %p326 = pneg %p325
      // Predicated region
      $region37: #{tpu_custom_call.1} parent=5 // pred_check
        _
      $region38: #{tpu_custom_call.1} parent=5 // pred_check_branch
        %328 = sbr.rel (%p325) target = $region40
      $region39: #{tpu_custom_call.1} parent=5 // pred_region
        %s329 = ssub.s32 %s19, 1
        // Predicated region
        $region41: #{tpu_custom_call.1} parent=39 // pred_check
          %p330 = pneg %p66
        $region42: #{tpu_custom_call.1} parent=39 // pred_check_branch
          %332 = sbr.rel (%p330) target = $region44
        $region43: #{tpu_custom_call.1} parent=39 // pred_region
          %334 = dma.done [#allocation4], 4096
        $region44: #{tpu_custom_call.1} parent=39 // pred_fallthru
          _
        %s335 = sand.u32 %s24, 1
        %s336 = scalar_lea.sflag [#allocation7], %s335
        %s337 = sand.u32 %s81, 1
        %s338 = smul.addr %s337, 512
        %s339 = scalar_lea.vmem [#allocation6], %s338
        // Predicated region
        $region45: #{tpu_custom_call.1} parent=39 // pred_check
          %p340 = pneg %p94
        $region46: #{tpu_custom_call.1} parent=39 // pred_check_branch
          %342 = sbr.rel (%p340) target = $region48
        $region47: #{tpu_custom_call.1} parent=39 // pred_region
          %344 = dma.done %s336, 8192
        $region48: #{tpu_custom_call.1} parent=39 // pred_fallthru
          _
        %s345 = sand.u32 %s24, 1
        %s346 = scalar_lea.sflag [#allocation7], %s345
        %s347 = sand.u32 %s111, 1
        %s348 = smul.addr %s347, 2
        %s349 = scalar_lea.vmem [#allocation8], %s348
        // Predicated region
        $region49: #{tpu_custom_call.1} parent=39 // pred_check
          %p350 = pneg %p124
        $region50: #{tpu_custom_call.1} parent=39 // pred_check_branch
          %352 = sbr.rel (%p350) target = $region52
        $region51: #{tpu_custom_call.1} parent=39 // pred_region
          %354 = dma.done %s346, 32
        $region52: #{tpu_custom_call.1} parent=39 // pred_fallthru
          _
        // Predicated region
        $region53: #{tpu_custom_call.1} parent=39 // pred_check
          %p355 = pneg %p150
        $region54: #{tpu_custom_call.1} parent=39 // pred_check_branch
          %357 = sbr.rel (%p355) target = $region56
        $region55: #{tpu_custom_call.1} parent=39 // pred_region
          %359 = dma.done [#allocation10], 2048
        $region56: #{tpu_custom_call.1} parent=39 // pred_fallthru
          _
        // Predicated region
        $region57: #{tpu_custom_call.1} parent=39 // pred_check
          %p360 = pneg %p176
        $region58: #{tpu_custom_call.1} parent=39 // pred_check_branch
          %362 = sbr.rel (%p360) target = $region60
        $region59: #{tpu_custom_call.1} parent=39 // pred_region
          %364 = dma.done [#allocation10], 2048
        $region60: #{tpu_custom_call.1} parent=39 // pred_fallthru
          _
        %p365 = pneg %p66
        %p366 = pneg %p63
        %s367 = sand.u32 %s24, 1
        %s368 = scalar_lea.sflag [#allocation7], %s367
        %s369 = sand.u32 %s81, 1
        %s370 = smul.addr %s369, 512
        %s371 = scalar_lea.vmem [#allocation6], %s370
        %p372 = pneg %p94
        %p373 = pneg %p91
        %s374 = sand.u32 %s24, 1
        %s375 = scalar_lea.sflag [#allocation7], %s374
        %s376 = sand.u32 %s111, 1
        %s377 = smul.addr %s376, 2
        %s378 = scalar_lea.vmem [#allocation8], %s377
        %p379 = pneg %p124
        %p380 = pneg %p121
        %p381 = pneg %p150
        %p382 = pneg %p147
        %p383 = pneg %p176
        %p384 = pneg %p173
        %p385 = pneg %p204
        %p386 = pneg %p201
        %s387 = sand.u32 %s191, 1
        %s388 = scalar_lea.sflag [#allocation5], %s387
        %s389 = sand.u32 %s191, 1
        %s390 = smul.addr %s389, 128
        %s391 = scalar_lea.vmem [#allocation12], %s390
        %s392 = smul.u32 16, %s29
        %s393 = smul.u32 4, %s31
        %s394 = smul.u32 64, %s31
        %s395 = smul.u32 2, %s30
        %p396 = scmp.lt.s32.totalorder %s30, 2
        %s397 = scalar_select %p396, %s30, 2
        %s398 = smul.u32 2, %s397
        %s399 = smul.u32 16, %s29
        %s400 = smul.u32 16, %s29
        %s401 = smul.u32 16, %s29
        %s402 = smul.u32 2, %s30
        %p403 = scmp.eq.s32.totalorder %s31, 0
        // Predicated region
        $region61: #{tpu_custom_call.1} parent=39 // pred_check
          %p404 = pneg %p403
        $region62: #{tpu_custom_call.1} parent=39 // pred_check_branch
          %406 = sbr.rel (%p404) target = $region64
        $region63: #{tpu_custom_call.1} parent=39 // pred_region
          %407 = vst [vmem:[#allocation2] sm:$0xff] 0.0
          %408 = vst [vmem:[#allocation2 + $0x8] sm:$0xff] 0.0
          %409 = vst [vmem:[#allocation2 + $0x10] sm:$0xff] 0.0
          %410 = vst [vmem:[#allocation2 + $0x18] sm:$0xff] 0.0
          %411 = vst [vmem:[#allocation2 + $0x20] sm:$0xff] 0.0
          %412 = vst [vmem:[#allocation2 + $0x28] sm:$0xff] 0.0
          %413 = vst [vmem:[#allocation2 + $0x30] sm:$0xff] 0.0
          %414 = vst [vmem:[#allocation2 + $0x38] sm:$0xff] 0.0
          %415 = vst [vmem:[#allocation2 + $0x40] sm:$0xff] 0.0
          %416 = vst [vmem:[#allocation2 + $0x48] sm:$0xff] 0.0
          %417 = vst [vmem:[#allocation2 + $0x50] sm:$0xff] 0.0
          %418 = vst [vmem:[#allocation2 + $0x58] sm:$0xff] 0.0
          %419 = vst [vmem:[#allocation2 + $0x60] sm:$0xff] 0.0
          %420 = vst [vmem:[#allocation2 + $0x68] sm:$0xff] 0.0
          %421 = vst [vmem:[#allocation2 + $0x70] sm:$0xff] 0.0
          %422 = vst [vmem:[#allocation2 + $0x78] sm:$0xff] 0.0
          %423 = vst [vmem:[#allocation2 + $0x80] sm:$0xff] 0.0
          %424 = vst [vmem:[#allocation2 + $0x88] sm:$0xff] 0.0
          %425 = vst [vmem:[#allocation2 + $0x90] sm:$0xff] 0.0
          %426 = vst [vmem:[#allocation2 + $0x98] sm:$0xff] 0.0
          %427 = vst [vmem:[#allocation2 + $0xa0] sm:$0xff] 0.0
          %428 = vst [vmem:[#allocation2 + $0xa8] sm:$0xff] 0.0
          %429 = vst [vmem:[#allocation2 + $0xb0] sm:$0xff] 0.0
          %430 = vst [vmem:[#allocation2 + $0xb8] sm:$0xff] 0.0
          %431 = vst [vmem:[#allocation2 + $0xc0] sm:$0xff] 0.0
          %432 = vst [vmem:[#allocation2 + $0xc8] sm:$0xff] 0.0
          %433 = vst [vmem:[#allocation2 + $0xd0] sm:$0xff] 0.0
          %434 = vst [vmem:[#allocation2 + $0xd8] sm:$0xff] 0.0
          %435 = vst [vmem:[#allocation2 + $0xe0] sm:$0xff] 0.0
          %436 = vst [vmem:[#allocation2 + $0xe8] sm:$0xff] 0.0
          %437 = vst [vmem:[#allocation2 + $0xf0] sm:$0xff] 0.0
          %438 = vst [vmem:[#allocation2 + $0xf8] sm:$0xff] 0.0
        $region64: #{tpu_custom_call.1} parent=39 // pred_fallthru
          _
        %v439 = vld [vmem:[#allocation2] sm:$0xff]
        %v440 = vld [vmem:[#allocation2 + $0x8] sm:$0xff]
        %v441 = vld [vmem:[#allocation2 + $0x10] sm:$0xff]
        %v442 = vld [vmem:[#allocation2 + $0x18] sm:$0xff]
        %v443 = vld [vmem:[#allocation2 + $0x20] sm:$0xff]
        %v444 = vld [vmem:[#allocation2 + $0x28] sm:$0xff]
        %v445 = vld [vmem:[#allocation2 + $0x30] sm:$0xff]
        %v446 = vld [vmem:[#allocation2 + $0x38] sm:$0xff]
        %v447 = vld [vmem:[#allocation2 + $0x40] sm:$0xff]
        %v448 = vld [vmem:[#allocation2 + $0x48] sm:$0xff]
        %v449 = vld [vmem:[#allocation2 + $0x50] sm:$0xff]
        %v450 = vld [vmem:[#allocation2 + $0x58] sm:$0xff]
        %v451 = vld [vmem:[#allocation2 + $0x60] sm:$0xff]
        %v452 = vld [vmem:[#allocation2 + $0x68] sm:$0xff]
        %v453 = vld [vmem:[#allocation2 + $0x70] sm:$0xff]
        %v454 = vld [vmem:[#allocation2 + $0x78] sm:$0xff]
        %v455 = vld [vmem:[#allocation2 + $0x80] sm:$0xff]
        %v456 = vld [vmem:[#allocation2 + $0x88] sm:$0xff]
        %v457 = vld [vmem:[#allocation2 + $0x90] sm:$0xff]
        %v458 = vld [vmem:[#allocation2 + $0x98] sm:$0xff]
        %v459 = vld [vmem:[#allocation2 + $0xa0] sm:$0xff]
        %v460 = vld [vmem:[#allocation2 + $0xa8] sm:$0xff]
        %v461 = vld [vmem:[#allocation2 + $0xb0] sm:$0xff]
        %v462 = vld [vmem:[#allocation2 + $0xb8] sm:$0xff]
        %v463 = vld [vmem:[#allocation2 + $0xc0] sm:$0xff]
        %v464 = vld [vmem:[#allocation2 + $0xc8] sm:$0xff]
        %v465 = vld [vmem:[#allocation2 + $0xd0] sm:$0xff]
        %v466 = vld [vmem:[#allocation2 + $0xd8] sm:$0xff]
        %v467 = vld [vmem:[#allocation2 + $0xe0] sm:$0xff]
        %v468 = vld [vmem:[#allocation2 + $0xe8] sm:$0xff]
        %v469 = vld [vmem:[#allocation2 + $0xf0] sm:$0xff]
        %v470 = vld [vmem:[#allocation2 + $0xf8] sm:$0xff]
        %v471 = vld [vmem:[#allocation3] sm:$0xff]
        %v472 = vld [vmem:[#allocation3 + $0x8] sm:$0xff]
        %v473 = vld [vmem:[#allocation3 + $0x10] sm:$0xff]
        %v474 = vld [vmem:[#allocation3 + $0x18] sm:$0xff]
        %v475 = vld [vmem:[#allocation3 + $0x20] sm:$0xff]
        %v476 = vld [vmem:[#allocation3 + $0x28] sm:$0xff]
        %v477 = vld [vmem:[#allocation3 + $0x30] sm:$0xff]
        %v478 = vld [vmem:[#allocation3 + $0x38] sm:$0xff]
        %v479 = vld [vmem:[#allocation3 + $0x40] sm:$0xff]
        %v480 = vld [vmem:[#allocation3 + $0x48] sm:$0xff]
        %v481 = vld [vmem:[#allocation3 + $0x50] sm:$0xff]
        %v482 = vld [vmem:[#allocation3 + $0x58] sm:$0xff]
        %v483 = vld [vmem:[#allocation3 + $0x60] sm:$0xff]
        %v484 = vld [vmem:[#allocation3 + $0x68] sm:$0xff]
        %v485 = vld [vmem:[#allocation3 + $0x70] sm:$0xff]
        %v486 = vld [vmem:[#allocation3 + $0x78] sm:$0xff]
        %v487 = vld [vmem:[#allocation3 + $0x80] sm:$0xff]
        %v488 = vld [vmem:[#allocation3 + $0x88] sm:$0xff]
        %v489 = vld [vmem:[#allocation3 + $0x90] sm:$0xff]
        %v490 = vld [vmem:[#allocation3 + $0x98] sm:$0xff]
        %v491 = vld [vmem:[#allocation3 + $0xa0] sm:$0xff]
        %v492 = vld [vmem:[#allocation3 + $0xa8] sm:$0xff]
        %v493 = vld [vmem:[#allocation3 + $0xb0] sm:$0xff]
        %v494 = vld [vmem:[#allocation3 + $0xb8] sm:$0xff]
        %v495 = vld [vmem:[#allocation3 + $0xc0] sm:$0xff]
        %v496 = vld [vmem:[#allocation3 + $0xc8] sm:$0xff]
        %v497 = vld [vmem:[#allocation3 + $0xd0] sm:$0xff]
        %v498 = vld [vmem:[#allocation3 + $0xd8] sm:$0xff]
        %v499 = vld [vmem:[#allocation3 + $0xe0] sm:$0xff]
        %v500 = vld [vmem:[#allocation3 + $0xe8] sm:$0xff]
        %v501 = vld [vmem:[#allocation3 + $0xf0] sm:$0xff]
        %v502 = vld [vmem:[#allocation3 + $0xf8] sm:$0xff]
        %v503 = vld [vmem:[%s339] sm:$0xff]
        %v504 = vld [vmem:[%s339 + $0x8] sm:$0xff]
        %v505 = vld [vmem:[%s339 + $0x10] sm:$0xff]
        %v506 = vld [vmem:[%s339 + $0x18] sm:$0xff]
        %v507 = vld [vmem:[%s339 + $0x20] sm:$0xff]
        %v508 = vld [vmem:[%s339 + $0x28] sm:$0xff]
        %v509 = vld [vmem:[%s339 + $0x30] sm:$0xff]
        %v510 = vld [vmem:[%s339 + $0x38] sm:$0xff]
        %v511 = vld [vmem:[%s339 + $0x40] sm:$0xff]
        %v512 = vld [vmem:[%s339 + $0x48] sm:$0xff]
        %v513 = vld [vmem:[%s339 + $0x50] sm:$0xff]
        %v514 = vld [vmem:[%s339 + $0x58] sm:$0xff]
        %v515 = vld [vmem:[%s339 + $0x60] sm:$0xff]
        %v516 = vld [vmem:[%s339 + $0x68] sm:$0xff]
        %v517 = vld [vmem:[%s339 + $0x70] sm:$0xff]
        %v518 = vld [vmem:[%s339 + $0x78] sm:$0xff]
        %v519 = vld [vmem:[%s339 + $0x80] sm:$0xff]
        %v520 = vld [vmem:[%s339 + $0x88] sm:$0xff]
        %v521 = vld [vmem:[%s339 + $0x90] sm:$0xff]
        %v522 = vld [vmem:[%s339 + $0x98] sm:$0xff]
        %v523 = vld [vmem:[%s339 + $0xa0] sm:$0xff]
        %v524 = vld [vmem:[%s339 + $0xa8] sm:$0xff]
        %v525 = vld [vmem:[%s339 + $0xb0] sm:$0xff]
        %v526 = vld [vmem:[%s339 + $0xb8] sm:$0xff]
        %v527 = vld [vmem:[%s339 + $0xc0] sm:$0xff]
        %v528 = vld [vmem:[%s339 + $0xc8] sm:$0xff]
        %v529 = vld [vmem:[%s339 + $0xd0] sm:$0xff]
        %v530 = vld [vmem:[%s339 + $0xd8] sm:$0xff]
        %v531 = vld [vmem:[%s339 + $0xe0] sm:$0xff]
        %v532 = vld [vmem:[%s339 + $0xe8] sm:$0xff]
        %v533 = vld [vmem:[%s339 + $0xf0] sm:$0xff]
        %v534 = vld [vmem:[%s339 + $0xf8] sm:$0xff]
        %v535 = vld [vmem:[%s339 + $0x100] sm:$0xff]
        %v536 = vld [vmem:[%s339 + $0x108] sm:$0xff]
        %v537 = vld [vmem:[%s339 + $0x110] sm:$0xff]
        %v538 = vld [vmem:[%s339 + $0x118] sm:$0xff]
        %v539 = vld [vmem:[%s339 + $0x120] sm:$0xff]
        %v540 = vld [vmem:[%s339 + $0x128] sm:$0xff]
        %v541 = vld [vmem:[%s339 + $0x130] sm:$0xff]
        %v542 = vld [vmem:[%s339 + $0x138] sm:$0xff]
        %v543 = vld [vmem:[%s339 + $0x140] sm:$0xff]
        %v544 = vld [vmem:[%s339 + $0x148] sm:$0xff]
        %v545 = vld [vmem:[%s339 + $0x150] sm:$0xff]
        %v546 = vld [vmem:[%s339 + $0x158] sm:$0xff]
        %v547 = vld [vmem:[%s339 + $0x160] sm:$0xff]
        %v548 = vld [vmem:[%s339 + $0x168] sm:$0xff]
        %v549 = vld [vmem:[%s339 + $0x170] sm:$0xff]
        %v550 = vld [vmem:[%s339 + $0x178] sm:$0xff]
        %v551 = vld [vmem:[%s339 + $0x180] sm:$0xff]
        %v552 = vld [vmem:[%s339 + $0x188] sm:$0xff]
        %v553 = vld [vmem:[%s339 + $0x190] sm:$0xff]
        %v554 = vld [vmem:[%s339 + $0x198] sm:$0xff]
        %v555 = vld [vmem:[%s339 + $0x1a0] sm:$0xff]
        %v556 = vld [vmem:[%s339 + $0x1a8] sm:$0xff]
        %v557 = vld [vmem:[%s339 + $0x1b0] sm:$0xff]
        %v558 = vld [vmem:[%s339 + $0x1b8] sm:$0xff]
        %v559 = vld [vmem:[%s339 + $0x1c0] sm:$0xff]
        %v560 = vld [vmem:[%s339 + $0x1c8] sm:$0xff]
        %v561 = vld [vmem:[%s339 + $0x1d0] sm:$0xff]
        %v562 = vld [vmem:[%s339 + $0x1d8] sm:$0xff]
        %v563 = vld [vmem:[%s339 + $0x1e0] sm:$0xff]
        %v564 = vld [vmem:[%s339 + $0x1e8] sm:$0xff]
        %v565 = vld [vmem:[%s339 + $0x1f0] sm:$0xff]
        %v566 = vld [vmem:[%s339 + $0x1f8] sm:$0xff]
        %v599 = vunpack.c.l.b16 %v471
        %v600 = vunpack.c.h.b16 %v471
        %v601 = vunpack.c.l.b16 %v472
        %v602 = vunpack.c.h.b16 %v472
        %v603 = vunpack.c.l.b16 %v473
        %v604 = vunpack.c.h.b16 %v473
        %v605 = vunpack.c.l.b16 %v474
        %v606 = vunpack.c.h.b16 %v474
        %v607 = vunpack.c.l.b16 %v475
        %v608 = vunpack.c.h.b16 %v475
        %v609 = vunpack.c.l.b16 %v476
        %v610 = vunpack.c.h.b16 %v476
        %v611 = vunpack.c.l.b16 %v477
        %v612 = vunpack.c.h.b16 %v477
        %v613 = vunpack.c.l.b16 %v478
        %v614 = vunpack.c.h.b16 %v478
        %v615 = vunpack.c.l.b16 %v479
        %v616 = vunpack.c.h.b16 %v479
        %v617 = vunpack.c.l.b16 %v480
        %v618 = vunpack.c.h.b16 %v480
        %v619 = vunpack.c.l.b16 %v481
        %v620 = vunpack.c.h.b16 %v481
        %v621 = vunpack.c.l.b16 %v482
        %v622 = vunpack.c.h.b16 %v482
        %v623 = vunpack.c.l.b16 %v483
        %v624 = vunpack.c.h.b16 %v483
        %v625 = vunpack.c.l.b16 %v484
        %v626 = vunpack.c.h.b16 %v484
        %v627 = vunpack.c.l.b16 %v485
        %v628 = vunpack.c.h.b16 %v485
        %v629 = vunpack.c.l.b16 %v486
        %v630 = vunpack.c.h.b16 %v486
        %v631 = vunpack.c.l.b16 %v487
        %v632 = vunpack.c.h.b16 %v487
        %v633 = vunpack.c.l.b16 %v488
        %v634 = vunpack.c.h.b16 %v488
        %v635 = vunpack.c.l.b16 %v489
        %v636 = vunpack.c.h.b16 %v489
        %v637 = vunpack.c.l.b16 %v490
        %v638 = vunpack.c.h.b16 %v490
        %v639 = vunpack.c.l.b16 %v491
        %v640 = vunpack.c.h.b16 %v491
        %v641 = vunpack.c.l.b16 %v492
        %v642 = vunpack.c.h.b16 %v492
        %v643 = vunpack.c.l.b16 %v493
        %v644 = vunpack.c.h.b16 %v493
        %v645 = vunpack.c.l.b16 %v494
        %v646 = vunpack.c.h.b16 %v494
        %v647 = vunpack.c.l.b16 %v495
        %v648 = vunpack.c.h.b16 %v495
        %v649 = vunpack.c.l.b16 %v496
        %v650 = vunpack.c.h.b16 %v496
        %v651 = vunpack.c.l.b16 %v497
        %v652 = vunpack.c.h.b16 %v497
        %v653 = vunpack.c.l.b16 %v498
        %v654 = vunpack.c.h.b16 %v498
        %v655 = vunpack.c.l.b16 %v499
        %v656 = vunpack.c.h.b16 %v499
        %v657 = vunpack.c.l.b16 %v500
        %v658 = vunpack.c.h.b16 %v500
        %v659 = vunpack.c.l.b16 %v501
        %v660 = vunpack.c.h.b16 %v501
        %v661 = vunpack.c.l.b16 %v502
        %v662 = vunpack.c.h.b16 %v502
        %v663 = vpack.c.b16 %v603, %v599
        %v664 = vpack.c.b16 %v604, %v600
        %v665 = vpack.c.b16 %v605, %v601
        %v666 = vpack.c.b16 %v606, %v602
        %v667 = vpack.c.b16 %v611, %v607
        %v668 = vpack.c.b16 %v612, %v608
        %v669 = vpack.c.b16 %v613, %v609
        %v670 = vpack.c.b16 %v614, %v610
        %v671 = vpack.c.b16 %v619, %v615
        %v672 = vpack.c.b16 %v620, %v616
        %v673 = vpack.c.b16 %v621, %v617
        %v674 = vpack.c.b16 %v622, %v618
        %v675 = vpack.c.b16 %v627, %v623
        %v676 = vpack.c.b16 %v628, %v624
        %v677 = vpack.c.b16 %v629, %v625
        %v678 = vpack.c.b16 %v630, %v626
        %v679 = vpack.c.b16 %v635, %v631
        %v680 = vpack.c.b16 %v636, %v632
        %v681 = vpack.c.b16 %v637, %v633
        %v682 = vpack.c.b16 %v638, %v634
        %v683 = vpack.c.b16 %v643, %v639
        %v684 = vpack.c.b16 %v644, %v640
        %v685 = vpack.c.b16 %v645, %v641
        %v686 = vpack.c.b16 %v646, %v642
        %v687 = vpack.c.b16 %v651, %v647
        %v688 = vpack.c.b16 %v652, %v648
        %v689 = vpack.c.b16 %v653, %v649
        %v690 = vpack.c.b16 %v654, %v650
        %v691 = vpack.c.b16 %v659, %v655
        %v692 = vpack.c.b16 %v660, %v656
        %v693 = vpack.c.b16 %v661, %v657
        %v694 = vpack.c.b16 %v662, %v658
        %v791 = vunpack.c.l.b16 %v503
        %v792 = vunpack.c.h.b16 %v503
        %v793 = vunpack.c.l.b16 %v504
        %v794 = vunpack.c.h.b16 %v504
        %v795 = vunpack.c.l.b16 %v505
        %v796 = vunpack.c.h.b16 %v505
        %v797 = vunpack.c.l.b16 %v506
        %v798 = vunpack.c.h.b16 %v506
        %v799 = vunpack.c.l.b16 %v507
        %v800 = vunpack.c.h.b16 %v507
        %v801 = vunpack.c.l.b16 %v508
        %v802 = vunpack.c.h.b16 %v508
        %v803 = vunpack.c.l.b16 %v509
        %v804 = vunpack.c.h.b16 %v509
        %v805 = vunpack.c.l.b16 %v510
        %v806 = vunpack.c.h.b16 %v510
        %v807 = vunpack.c.l.b16 %v511
        %v808 = vunpack.c.h.b16 %v511
        %v809 = vunpack.c.l.b16 %v512
        %v810 = vunpack.c.h.b16 %v512
        %v811 = vunpack.c.l.b16 %v513
        %v812 = vunpack.c.h.b16 %v513
        %v813 = vunpack.c.l.b16 %v514
        %v814 = vunpack.c.h.b16 %v514
        %v815 = vunpack.c.l.b16 %v515
        %v816 = vunpack.c.h.b16 %v515
        %v817 = vunpack.c.l.b16 %v516
        %v818 = vunpack.c.h.b16 %v516
        %v819 = vunpack.c.l.b16 %v517
        %v820 = vunpack.c.h.b16 %v517
        %v821 = vunpack.c.l.b16 %v518
        %v822 = vunpack.c.h.b16 %v518
        %v823 = vunpack.c.l.b16 %v519
        %v824 = vunpack.c.h.b16 %v519
        %v825 = vunpack.c.l.b16 %v520
        %v826 = vunpack.c.h.b16 %v520
        %v827 = vunpack.c.l.b16 %v521
        %v828 = vunpack.c.h.b16 %v521
        %v829 = vunpack.c.l.b16 %v522
        %v830 = vunpack.c.h.b16 %v522
        %v831 = vunpack.c.l.b16 %v523
        %v832 = vunpack.c.h.b16 %v523
        %v833 = vunpack.c.l.b16 %v524
        %v834 = vunpack.c.h.b16 %v524
        %v835 = vunpack.c.l.b16 %v525
        %v836 = vunpack.c.h.b16 %v525
        %v837 = vunpack.c.l.b16 %v526
        %v838 = vunpack.c.h.b16 %v526
        %v839 = vunpack.c.l.b16 %v527
        %v840 = vunpack.c.h.b16 %v527
        %v841 = vunpack.c.l.b16 %v528
        %v842 = vunpack.c.h.b16 %v528
        %v843 = vunpack.c.l.b16 %v529
        %v844 = vunpack.c.h.b16 %v529
        %v845 = vunpack.c.l.b16 %v530
        %v846 = vunpack.c.h.b16 %v530
        %v847 = vunpack.c.l.b16 %v531
        %v848 = vunpack.c.h.b16 %v531
        %v849 = vunpack.c.l.b16 %v532
        %v850 = vunpack.c.h.b16 %v532
        %v851 = vunpack.c.l.b16 %v533
        %v852 = vunpack.c.h.b16 %v533
        %v853 = vunpack.c.l.b16 %v534
        %v854 = vunpack.c.h.b16 %v534
        %v855 = vunpack.c.l.b16 %v535
        %v856 = vunpack.c.h.b16 %v535
        %v857 = vunpack.c.l.b16 %v536
        %v858 = vunpack.c.h.b16 %v536
        %v859 = vunpack.c.l.b16 %v537
        %v860 = vunpack.c.h.b16 %v537
        %v861 = vunpack.c.l.b16 %v538
        %v862 = vunpack.c.h.b16 %v538
        %v863 = vunpack.c.l.b16 %v539
        %v864 = vunpack.c.h.b16 %v539
        %v865 = vunpack.c.l.b16 %v540
        %v866 = vunpack.c.h.b16 %v540
        %v867 = vunpack.c.l.b16 %v541
        %v868 = vunpack.c.h.b16 %v541
        %v869 = vunpack.c.l.b16 %v542
        %v870 = vunpack.c.h.b16 %v542
        %v871 = vunpack.c.l.b16 %v543
        %v872 = vunpack.c.h.b16 %v543
        %v873 = vunpack.c.l.b16 %v544
        %v874 = vunpack.c.h.b16 %v544
        %v875 = vunpack.c.l.b16 %v545
        %v876 = vunpack.c.h.b16 %v545
        %v877 = vunpack.c.l.b16 %v546
        %v878 = vunpack.c.h.b16 %v546
        %v879 = vunpack.c.l.b16 %v547
        %v880 = vunpack.c.h.b16 %v547
        %v881 = vunpack.c.l.b16 %v548
        %v882 = vunpack.c.h.b16 %v548
        %v883 = vunpack.c.l.b16 %v549
        %v884 = vunpack.c.h.b16 %v549
        %v885 = vunpack.c.l.b16 %v550
        %v886 = vunpack.c.h.b16 %v550
        %v887 = vunpack.c.l.b16 %v551
        %v888 = vunpack.c.h.b16 %v551
        %v889 = vunpack.c.l.b16 %v552
        %v890 = vunpack.c.h.b16 %v552
        %v891 = vunpack.c.l.b16 %v553
        %v892 = vunpack.c.h.b16 %v553
        %v893 = vunpack.c.l.b16 %v554
        %v894 = vunpack.c.h.b16 %v554
        %v895 = vunpack.c.l.b16 %v555
        %v896 = vunpack.c.h.b16 %v555
        %v897 = vunpack.c.l.b16 %v556
        %v898 = vunpack.c.h.b16 %v556
        %v899 = vunpack.c.l.b16 %v557
        %v900 = vunpack.c.h.b16 %v557
        %v901 = vunpack.c.l.b16 %v558
        %v902 = vunpack.c.h.b16 %v558
        %v903 = vunpack.c.l.b16 %v559
        %v904 = vunpack.c.h.b16 %v559
        %v905 = vunpack.c.l.b16 %v560
        %v906 = vunpack.c.h.b16 %v560
        %v907 = vunpack.c.l.b16 %v561
        %v908 = vunpack.c.h.b16 %v561
        %v909 = vunpack.c.l.b16 %v562
        %v910 = vunpack.c.h.b16 %v562
        %v911 = vunpack.c.l.b16 %v563
        %v912 = vunpack.c.h.b16 %v563
        %v913 = vunpack.c.l.b16 %v564
        %v914 = vunpack.c.h.b16 %v564
        %v915 = vunpack.c.l.b16 %v565
        %v916 = vunpack.c.h.b16 %v565
        %v917 = vunpack.c.l.b16 %v566
        %v918 = vunpack.c.h.b16 %v566
        %v919 = vpack.c.b16 %v793, %v791
        %v920 = vpack.c.b16 %v794, %v792
        %v921 = vpack.c.b16 %v797, %v795
        %v922 = vpack.c.b16 %v798, %v796
        %v923 = vpack.c.b16 %v801, %v799
        %v924 = vpack.c.b16 %v802, %v800
        %v925 = vpack.c.b16 %v805, %v803
        %v926 = vpack.c.b16 %v806, %v804
        %v927 = vpack.c.b16 %v809, %v807
        %v928 = vpack.c.b16 %v810, %v808
        %v929 = vpack.c.b16 %v813, %v811
        %v930 = vpack.c.b16 %v814, %v812
        %v931 = vpack.c.b16 %v817, %v815
        %v932 = vpack.c.b16 %v818, %v816
        %v933 = vpack.c.b16 %v821, %v819
        %v934 = vpack.c.b16 %v822, %v820
        %v935 = vpack.c.b16 %v825, %v823
        %v936 = vpack.c.b16 %v826, %v824
        %v937 = vpack.c.b16 %v829, %v827
        %v938 = vpack.c.b16 %v830, %v828
        %v939 = vpack.c.b16 %v833, %v831
        %v940 = vpack.c.b16 %v834, %v832
        %v941 = vpack.c.b16 %v837, %v835
        %v942 = vpack.c.b16 %v838, %v836
        %v943 = vpack.c.b16 %v841, %v839
        %v944 = vpack.c.b16 %v842, %v840
        %v945 = vpack.c.b16 %v845, %v843
        %v946 = vpack.c.b16 %v846, %v844
        %v947 = vpack.c.b16 %v849, %v847
        %v948 = vpack.c.b16 %v850, %v848
        %v949 = vpack.c.b16 %v853, %v851
        %v950 = vpack.c.b16 %v854, %v852
        %v951 = vpack.c.b16 %v857, %v855
        %v952 = vpack.c.b16 %v858, %v856
        %v953 = vpack.c.b16 %v861, %v859
        %v954 = vpack.c.b16 %v862, %v860
        %v955 = vpack.c.b16 %v865, %v863
        %v956 = vpack.c.b16 %v866, %v864
        %v957 = vpack.c.b16 %v869, %v867
        %v958 = vpack.c.b16 %v870, %v868
        %v959 = vpack.c.b16 %v873, %v871
        %v960 = vpack.c.b16 %v874, %v872
        %v961 = vpack.c.b16 %v877, %v875
        %v962 = vpack.c.b16 %v878, %v876
        %v963 = vpack.c.b16 %v881, %v879
        %v964 = vpack.c.b16 %v882, %v880
        %v965 = vpack.c.b16 %v885, %v883
        %v966 = vpack.c.b16 %v886, %v884
        %v967 = vpack.c.b16 %v889, %v887
        %v968 = vpack.c.b16 %v890, %v888
        %v969 = vpack.c.b16 %v893, %v891
        %v970 = vpack.c.b16 %v894, %v892
        %v971 = vpack.c.b16 %v897, %v895
        %v972 = vpack.c.b16 %v898, %v896
        %v973 = vpack.c.b16 %v901, %v899
        %v974 = vpack.c.b16 %v902, %v900
        %v975 = vpack.c.b16 %v905, %v903
        %v976 = vpack.c.b16 %v906, %v904
        %v977 = vpack.c.b16 %v909, %v907
        %v978 = vpack.c.b16 %v910, %v908
        %v979 = vpack.c.b16 %v913, %v911
        %v980 = vpack.c.b16 %v914, %v912
        %v981 = vpack.c.b16 %v917, %v915
        %v982 = vpack.c.b16 %v918, %v916
        %1047 = vmatpush.bf16.msra.mxu0 %v933
        %1048 = vmatpush.bf16.msra.mxu0 %v931
        %1049 = vmatpush.bf16.msra.mxu0 %v929
        %1050 = vmatpush.bf16.msra.mxu0 %v927
        %1051 = vmatpush.bf16.msra.mxu0 %v925
        %1052 = vmatpush.bf16.msra.mxu0 %v923
        %1053 = vmatpush.bf16.msra.mxu0 %v921
        %1054 = vmatpush.bf16.msra.mxu0 %v919
        %1055 = vmatmul.bf16.gmra.mxu0 %v663
        %v1056 = vpop.f32.mrf.mxu0
        %v1057 = vadd.f32 0.0, %v1056
        %v1058 = vpop.f32.mrf.mxu0
        %v1059 = vadd.f32 0.0, %v1058
        %1060 = vmatmul.bf16.gmra.mxu0 %v667
        %v1061 = vpop.f32.mrf.mxu0
        %v1062 = vadd.f32 0.0, %v1061
        %v1063 = vpop.f32.mrf.mxu0
        %v1064 = vadd.f32 0.0, %v1063
        %1065 = vmatmul.bf16.gmra.mxu0 %v671
        %v1066 = vpop.f32.mrf.mxu0
        %v1067 = vadd.f32 0.0, %v1066
        %v1068 = vpop.f32.mrf.mxu0
        %v1069 = vadd.f32 0.0, %v1068
        %1070 = vmatmul.bf16.gmra.mxu0 %v675
        %v1071 = vpop.f32.mrf.mxu0
        %v1072 = vadd.f32 0.0, %v1071
        %v1073 = vpop.f32.mrf.mxu0
        %v1074 = vadd.f32 0.0, %v1073
        %1075 = vmatmul.bf16.gmra.mxu0 %v679
        %v1076 = vpop.f32.mrf.mxu0
        %v1077 = vadd.f32 0.0, %v1076
        %v1078 = vpop.f32.mrf.mxu0
        %v1079 = vadd.f32 0.0, %v1078
        %1080 = vmatmul.bf16.gmra.mxu0 %v683
        %v1081 = vpop.f32.mrf.mxu0
        %v1082 = vadd.f32 0.0, %v1081
        %v1083 = vpop.f32.mrf.mxu0
        %v1084 = vadd.f32 0.0, %v1083
        %1085 = vmatmul.bf16.gmra.mxu0 %v687
        %v1086 = vpop.f32.mrf.mxu0
        %v1087 = vadd.f32 0.0, %v1086
        %v1088 = vpop.f32.mrf.mxu0
        %v1089 = vadd.f32 0.0, %v1088
        %1090 = vmatmul.bf16.gmra.mxu0 %v691
        %v1091 = vpop.f32.mrf.mxu0
        %v1092 = vadd.f32 0.0, %v1091
        %v1093 = vpop.f32.mrf.mxu0
        %v1094 = vadd.f32 0.0, %v1093
        %1095 = vdwg.mxu0
        %1096 = vmatpush.bf16.msra.mxu0 %v949
        %1097 = vmatpush.bf16.msra.mxu0 %v947
        %1098 = vmatpush.bf16.msra.mxu0 %v945
        %1099 = vmatpush.bf16.msra.mxu0 %v943
        %1100 = vmatpush.bf16.msra.mxu0 %v941
        %1101 = vmatpush.bf16.msra.mxu0 %v939
        %1102 = vmatpush.bf16.msra.mxu0 %v937
        %1103 = vmatpush.bf16.msra.mxu0 %v935
        %1104 = vmatmul.bf16.gmra.mxu0 %v664
        %v1105 = vpop.f32.mrf.mxu0
        %v1106 = vadd.f32 %v1057, %v1105
        %v1107 = vpop.f32.mrf.mxu0
        %v1108 = vadd.f32 %v1059, %v1107
        %1109 = vmatmul.bf16.gmra.mxu0 %v668
        %v1110 = vpop.f32.mrf.mxu0
        %v1111 = vadd.f32 %v1062, %v1110
        %v1112 = vpop.f32.mrf.mxu0
        %v1113 = vadd.f32 %v1064, %v1112
        %1114 = vmatmul.bf16.gmra.mxu0 %v672
        %v1115 = vpop.f32.mrf.mxu0
        %v1116 = vadd.f32 %v1067, %v1115
        %v1117 = vpop.f32.mrf.mxu0
        %v1118 = vadd.f32 %v1069, %v1117
        %1119 = vmatmul.bf16.gmra.mxu0 %v676
        %v1120 = vpop.f32.mrf.mxu0
        %v1121 = vadd.f32 %v1072, %v1120
        %v1122 = vpop.f32.mrf.mxu0
        %v1123 = vadd.f32 %v1074, %v1122
        %1124 = vmatmul.bf16.gmra.mxu0 %v680
        %v1125 = vpop.f32.mrf.mxu0
        %v1126 = vadd.f32 %v1077, %v1125
        %v1127 = vpop.f32.mrf.mxu0
        %v1128 = vadd.f32 %v1079, %v1127
        %1129 = vmatmul.bf16.gmra.mxu0 %v684
        %v1130 = vpop.f32.mrf.mxu0
        %v1131 = vadd.f32 %v1082, %v1130
        %v1132 = vpop.f32.mrf.mxu0
        %v1133 = vadd.f32 %v1084, %v1132
        %1134 = vmatmul.bf16.gmra.mxu0 %v688
        %v1135 = vpop.f32.mrf.mxu0
        %v1136 = vadd.f32 %v1087, %v1135
        %v1137 = vpop.f32.mrf.mxu0
        %v1138 = vadd.f32 %v1089, %v1137
        %1139 = vmatmul.bf16.gmra.mxu0 %v692
        %v1140 = vpop.f32.mrf.mxu0
        %v1141 = vadd.f32 %v1092, %v1140
        %v1142 = vpop.f32.mrf.mxu0
        %v1143 = vadd.f32 %v1094, %v1142
        %1144 = vdwg.mxu0
        %1145 = vmatpush.bf16.msra.mxu0 %v965
        %1146 = vmatpush.bf16.msra.mxu0 %v963
        %1147 = vmatpush.bf16.msra.mxu0 %v961
        %1148 = vmatpush.bf16.msra.mxu0 %v959
        %1149 = vmatpush.bf16.msra.mxu0 %v957
        %1150 = vmatpush.bf16.msra.mxu0 %v955
        %1151 = vmatpush.bf16.msra.mxu0 %v953
        %1152 = vmatpush.bf16.msra.mxu0 %v951
        %1153 = vmatmul.bf16.gmra.mxu0 %v665
        %v1154 = vpop.f32.mrf.mxu0
        %v1155 = vadd.f32 %v1106, %v1154
        %v1156 = vpop.f32.mrf.mxu0
        %v1157 = vadd.f32 %v1108, %v1156
        %1158 = vmatmul.bf16.gmra.mxu0 %v669
        %v1159 = vpop.f32.mrf.mxu0
        %v1160 = vadd.f32 %v1111, %v1159
        %v1161 = vpop.f32.mrf.mxu0
        %v1162 = vadd.f32 %v1113, %v1161
        %1163 = vmatmul.bf16.gmra.mxu0 %v673
        %v1164 = vpop.f32.mrf.mxu0
        %v1165 = vadd.f32 %v1116, %v1164
        %v1166 = vpop.f32.mrf.mxu0
        %v1167 = vadd.f32 %v1118, %v1166
        %1168 = vmatmul.bf16.gmra.mxu0 %v677
        %v1169 = vpop.f32.mrf.mxu0
        %v1170 = vadd.f32 %v1121, %v1169
        %v1171 = vpop.f32.mrf.mxu0
        %v1172 = vadd.f32 %v1123, %v1171
        %1173 = vmatmul.bf16.gmra.mxu0 %v681
        %v1174 = vpop.f32.mrf.mxu0
        %v1175 = vadd.f32 %v1126, %v1174
        %v1176 = vpop.f32.mrf.mxu0
        %v1177 = vadd.f32 %v1128, %v1176
        %1178 = vmatmul.bf16.gmra.mxu0 %v685
        %v1179 = vpop.f32.mrf.mxu0
        %v1180 = vadd.f32 %v1131, %v1179
        %v1181 = vpop.f32.mrf.mxu0
        %v1182 = vadd.f32 %v1133, %v1181
        %1183 = vmatmul.bf16.gmra.mxu0 %v689
        %v1184 = vpop.f32.mrf.mxu0
        %v1185 = vadd.f32 %v1136, %v1184
        %v1186 = vpop.f32.mrf.mxu0
        %v1187 = vadd.f32 %v1138, %v1186
        %1188 = vmatmul.bf16.gmra.mxu0 %v693
        %v1189 = vpop.f32.mrf.mxu0
        %v1190 = vadd.f32 %v1141, %v1189
        %v1191 = vpop.f32.mrf.mxu0
        %v1192 = vadd.f32 %v1143, %v1191
        %1193 = vdwg.mxu0
        %1194 = vmatpush.bf16.msra.mxu0 %v981
        %1195 = vmatpush.bf16.msra.mxu0 %v979
        %1196 = vmatpush.bf16.msra.mxu0 %v977
        %1197 = vmatpush.bf16.msra.mxu0 %v975
        %1198 = vmatpush.bf16.msra.mxu0 %v973
        %1199 = vmatpush.bf16.msra.mxu0 %v971
        %1200 = vmatpush.bf16.msra.mxu0 %v969
        %1201 = vmatpush.bf16.msra.mxu0 %v967
        %1202 = vmatmul.bf16.gmra.mxu0 %v666
        %v1203 = vpop.f32.mrf.mxu0
        %v1204 = vadd.f32 %v1155, %v1203
        %v1205 = vpop.f32.mrf.mxu0
        %v1206 = vadd.f32 %v1157, %v1205
        %1207 = vmatmul.bf16.gmra.mxu0 %v670
        %v1208 = vpop.f32.mrf.mxu0
        %v1209 = vadd.f32 %v1160, %v1208
        %v1210 = vpop.f32.mrf.mxu0
        %v1211 = vadd.f32 %v1162, %v1210
        %1212 = vmatmul.bf16.gmra.mxu0 %v674
        %v1213 = vpop.f32.mrf.mxu0
        %v1214 = vadd.f32 %v1165, %v1213
        %v1215 = vpop.f32.mrf.mxu0
        %v1216 = vadd.f32 %v1167, %v1215
        %1217 = vmatmul.bf16.gmra.mxu0 %v678
        %v1218 = vpop.f32.mrf.mxu0
        %v1219 = vadd.f32 %v1170, %v1218
        %v1220 = vpop.f32.mrf.mxu0
        %v1221 = vadd.f32 %v1172, %v1220
        %1222 = vmatmul.bf16.gmra.mxu0 %v682
        %v1223 = vpop.f32.mrf.mxu0
        %v1224 = vadd.f32 %v1175, %v1223
        %v1225 = vpop.f32.mrf.mxu0
        %v1226 = vadd.f32 %v1177, %v1225
        %1227 = vmatmul.bf16.gmra.mxu0 %v686
        %v1228 = vpop.f32.mrf.mxu0
        %v1229 = vadd.f32 %v1180, %v1228
        %v1230 = vpop.f32.mrf.mxu0
        %v1231 = vadd.f32 %v1182, %v1230
        %1232 = vmatmul.bf16.gmra.mxu0 %v690
        %v1233 = vpop.f32.mrf.mxu0
        %v1234 = vadd.f32 %v1185, %v1233
        %v1235 = vpop.f32.mrf.mxu0
        %v1236 = vadd.f32 %v1187, %v1235
        %1237 = vmatmul.bf16.gmra.mxu0 %v694
        %v1238 = vpop.f32.mrf.mxu0
        %v1239 = vadd.f32 %v1190, %v1238
        %v1240 = vpop.f32.mrf.mxu0
        %v1241 = vadd.f32 %v1192, %v1240
        %1242 = vdwg.mxu0
        %1243 = vmatpush.bf16.msra.mxu0 %v934
        %1244 = vmatpush.bf16.msra.mxu0 %v932
        %1245 = vmatpush.bf16.msra.mxu0 %v930
        %1246 = vmatpush.bf16.msra.mxu0 %v928
        %1247 = vmatpush.bf16.msra.mxu0 %v926
        %1248 = vmatpush.bf16.msra.mxu0 %v924
        %1249 = vmatpush.bf16.msra.mxu0 %v922
        %1250 = vmatpush.bf16.msra.mxu0 %v920
        %1251 = vmatmul.bf16.gmra.mxu0 %v663
        %v1252 = vpop.f32.mrf.mxu0
        %v1253 = vadd.f32 0.0, %v1252
        %v1254 = vpop.f32.mrf.mxu0
        %v1255 = vadd.f32 0.0, %v1254
        %1256 = vmatmul.bf16.gmra.mxu0 %v667
        %v1257 = vpop.f32.mrf.mxu0
        %v1258 = vadd.f32 0.0, %v1257
        %v1259 = vpop.f32.mrf.mxu0
        %v1260 = vadd.f32 0.0, %v1259
        %1261 = vmatmul.bf16.gmra.mxu0 %v671
        %v1262 = vpop.f32.mrf.mxu0
        %v1263 = vadd.f32 0.0, %v1262
        %v1264 = vpop.f32.mrf.mxu0
        %v1265 = vadd.f32 0.0, %v1264
        %1266 = vmatmul.bf16.gmra.mxu0 %v675
        %v1267 = vpop.f32.mrf.mxu0
        %v1268 = vadd.f32 0.0, %v1267
        %v1269 = vpop.f32.mrf.mxu0
        %v1270 = vadd.f32 0.0, %v1269
        %1271 = vmatmul.bf16.gmra.mxu0 %v679
        %v1272 = vpop.f32.mrf.mxu0
        %v1273 = vadd.f32 0.0, %v1272
        %v1274 = vpop.f32.mrf.mxu0
        %v1275 = vadd.f32 0.0, %v1274
        %1276 = vmatmul.bf16.gmra.mxu0 %v683
        %v1277 = vpop.f32.mrf.mxu0
        %v1278 = vadd.f32 0.0, %v1277
        %v1279 = vpop.f32.mrf.mxu0
        %v1280 = vadd.f32 0.0, %v1279
        %1281 = vmatmul.bf16.gmra.mxu0 %v687
        %v1282 = vpop.f32.mrf.mxu0
        %v1283 = vadd.f32 0.0, %v1282
        %v1284 = vpop.f32.mrf.mxu0
        %v1285 = vadd.f32 0.0, %v1284
        %1286 = vmatmul.bf16.gmra.mxu0 %v691
        %v1287 = vpop.f32.mrf.mxu0
        %v1288 = vadd.f32 0.0, %v1287
        %v1289 = vpop.f32.mrf.mxu0
        %v1290 = vadd.f32 0.0, %v1289
        %1291 = vdwg.mxu0
        %1292 = vmatpush.bf16.msra.mxu0 %v950
        %1293 = vmatpush.bf16.msra.mxu0 %v948
        %1294 = vmatpush.bf16.msra.mxu0 %v946
        %1295 = vmatpush.bf16.msra.mxu0 %v944
        %1296 = vmatpush.bf16.msra.mxu0 %v942
        %1297 = vmatpush.bf16.msra.mxu0 %v940
        %1298 = vmatpush.bf16.msra.mxu0 %v938
        %1299 = vmatpush.bf16.msra.mxu0 %v936
        %1300 = vmatmul.bf16.gmra.mxu0 %v664
        %v1301 = vpop.f32.mrf.mxu0
        %v1302 = vadd.f32 %v1253, %v1301
        %v1303 = vpop.f32.mrf.mxu0
        %v1304 = vadd.f32 %v1255, %v1303
        %1305 = vmatmul.bf16.gmra.mxu0 %v668
        %v1306 = vpop.f32.mrf.mxu0
        %v1307 = vadd.f32 %v1258, %v1306
        %v1308 = vpop.f32.mrf.mxu0
        %v1309 = vadd.f32 %v1260, %v1308
        %1310 = vmatmul.bf16.gmra.mxu0 %v672
        %v1311 = vpop.f32.mrf.mxu0
        %v1312 = vadd.f32 %v1263, %v1311
        %v1313 = vpop.f32.mrf.mxu0
        %v1314 = vadd.f32 %v1265, %v1313
        %1315 = vmatmul.bf16.gmra.mxu0 %v676
        %v1316 = vpop.f32.mrf.mxu0
        %v1317 = vadd.f32 %v1268, %v1316
        %v1318 = vpop.f32.mrf.mxu0
        %v1319 = vadd.f32 %v1270, %v1318
        %1320 = vmatmul.bf16.gmra.mxu0 %v680
        %v1321 = vpop.f32.mrf.mxu0
        %v1322 = vadd.f32 %v1273, %v1321
        %v1323 = vpop.f32.mrf.mxu0
        %v1324 = vadd.f32 %v1275, %v1323
        %1325 = vmatmul.bf16.gmra.mxu0 %v684
        %v1326 = vpop.f32.mrf.mxu0
        %v1327 = vadd.f32 %v1278, %v1326
        %v1328 = vpop.f32.mrf.mxu0
        %v1329 = vadd.f32 %v1280, %v1328
        %1330 = vmatmul.bf16.gmra.mxu0 %v688
        %v1331 = vpop.f32.mrf.mxu0
        %v1332 = vadd.f32 %v1283, %v1331
        %v1333 = vpop.f32.mrf.mxu0
        %v1334 = vadd.f32 %v1285, %v1333
        %1335 = vmatmul.bf16.gmra.mxu0 %v692
        %v1336 = vpop.f32.mrf.mxu0
        %v1337 = vadd.f32 %v1288, %v1336
        %v1338 = vpop.f32.mrf.mxu0
        %v1339 = vadd.f32 %v1290, %v1338
        %1340 = vdwg.mxu0
        %1341 = vmatpush.bf16.msra.mxu0 %v966
        %1342 = vmatpush.bf16.msra.mxu0 %v964
        %1343 = vmatpush.bf16.msra.mxu0 %v962
        %1344 = vmatpush.bf16.msra.mxu0 %v960
        %1345 = vmatpush.bf16.msra.mxu0 %v958
        %1346 = vmatpush.bf16.msra.mxu0 %v956
        %1347 = vmatpush.bf16.msra.mxu0 %v954
        %1348 = vmatpush.bf16.msra.mxu0 %v952
        %1349 = vmatmul.bf16.gmra.mxu0 %v665
        %v1350 = vpop.f32.mrf.mxu0
        %v1351 = vadd.f32 %v1302, %v1350
        %v1352 = vpop.f32.mrf.mxu0
        %v1353 = vadd.f32 %v1304, %v1352
        %1354 = vmatmul.bf16.gmra.mxu0 %v669
        %v1355 = vpop.f32.mrf.mxu0
        %v1356 = vadd.f32 %v1307, %v1355
        %v1357 = vpop.f32.mrf.mxu0
        %v1358 = vadd.f32 %v1309, %v1357
        %1359 = vmatmul.bf16.gmra.mxu0 %v673
        %v1360 = vpop.f32.mrf.mxu0
        %v1361 = vadd.f32 %v1312, %v1360
        %v1362 = vpop.f32.mrf.mxu0
        %v1363 = vadd.f32 %v1314, %v1362
        %1364 = vmatmul.bf16.gmra.mxu0 %v677
        %v1365 = vpop.f32.mrf.mxu0
        %v1366 = vadd.f32 %v1317, %v1365
        %v1367 = vpop.f32.mrf.mxu0
        %v1368 = vadd.f32 %v1319, %v1367
        %1369 = vmatmul.bf16.gmra.mxu0 %v681
        %v1370 = vpop.f32.mrf.mxu0
        %v1371 = vadd.f32 %v1322, %v1370
        %v1372 = vpop.f32.mrf.mxu0
        %v1373 = vadd.f32 %v1324, %v1372
        %1374 = vmatmul.bf16.gmra.mxu0 %v685
        %v1375 = vpop.f32.mrf.mxu0
        %v1376 = vadd.f32 %v1327, %v1375
        %v1377 = vpop.f32.mrf.mxu0
        %v1378 = vadd.f32 %v1329, %v1377
        %1379 = vmatmul.bf16.gmra.mxu0 %v689
        %v1380 = vpop.f32.mrf.mxu0
        %v1381 = vadd.f32 %v1332, %v1380
        %v1382 = vpop.f32.mrf.mxu0
        %v1383 = vadd.f32 %v1334, %v1382
        %1384 = vmatmul.bf16.gmra.mxu0 %v693
        %v1385 = vpop.f32.mrf.mxu0
        %v1386 = vadd.f32 %v1337, %v1385
        %v1387 = vpop.f32.mrf.mxu0
        %v1388 = vadd.f32 %v1339, %v1387
        %1389 = vdwg.mxu0
        %1390 = vmatpush.bf16.msra.mxu0 %v982
        %1391 = vmatpush.bf16.msra.mxu0 %v980
        %1392 = vmatpush.bf16.msra.mxu0 %v978
        %1393 = vmatpush.bf16.msra.mxu0 %v976
        %1394 = vmatpush.bf16.msra.mxu0 %v974
        %1395 = vmatpush.bf16.msra.mxu0 %v972
        %1396 = vmatpush.bf16.msra.mxu0 %v970
        %1397 = vmatpush.bf16.msra.mxu0 %v968
        %1398 = vmatmul.bf16.gmra.mxu0 %v666
        %v1399 = vpop.f32.mrf.mxu0
        %v1400 = vadd.f32 %v1351, %v1399
        %v1401 = vpop.f32.mrf.mxu0
        %v1402 = vadd.f32 %v1353, %v1401
        %1403 = vmatmul.bf16.gmra.mxu0 %v670
        %v1404 = vpop.f32.mrf.mxu0
        %v1405 = vadd.f32 %v1356, %v1404
        %v1406 = vpop.f32.mrf.mxu0
        %v1407 = vadd.f32 %v1358, %v1406
        %1408 = vmatmul.bf16.gmra.mxu0 %v674
        %v1409 = vpop.f32.mrf.mxu0
        %v1410 = vadd.f32 %v1361, %v1409
        %v1411 = vpop.f32.mrf.mxu0
        %v1412 = vadd.f32 %v1363, %v1411
        %1413 = vmatmul.bf16.gmra.mxu0 %v678
        %v1414 = vpop.f32.mrf.mxu0
        %v1415 = vadd.f32 %v1366, %v1414
        %v1416 = vpop.f32.mrf.mxu0
        %v1417 = vadd.f32 %v1368, %v1416
        %1418 = vmatmul.bf16.gmra.mxu0 %v682
        %v1419 = vpop.f32.mrf.mxu0
        %v1420 = vadd.f32 %v1371, %v1419
        %v1421 = vpop.f32.mrf.mxu0
        %v1422 = vadd.f32 %v1373, %v1421
        %1423 = vmatmul.bf16.gmra.mxu0 %v686
        %v1424 = vpop.f32.mrf.mxu0
        %v1425 = vadd.f32 %v1376, %v1424
        %v1426 = vpop.f32.mrf.mxu0
        %v1427 = vadd.f32 %v1378, %v1426
        %1428 = vmatmul.bf16.gmra.mxu0 %v690
        %v1429 = vpop.f32.mrf.mxu0
        %v1430 = vadd.f32 %v1381, %v1429
        %v1431 = vpop.f32.mrf.mxu0
        %v1432 = vadd.f32 %v1383, %v1431
        %1433 = vmatmul.bf16.gmra.mxu0 %v694
        %v1434 = vpop.f32.mrf.mxu0
        %v1435 = vadd.f32 %v1386, %v1434
        %v1436 = vpop.f32.mrf.mxu0
        %v1437 = vadd.f32 %v1388, %v1436
        %1438 = vdwg.mxu0
        %v1439 = vadd.f32 %v439, %v1204
        %v1440 = vadd.f32 %v440, %v1400
        %v1441 = vadd.f32 %v441, %v1206
        %v1442 = vadd.f32 %v442, %v1402
        %v1443 = vadd.f32 %v443, %v1209
        %v1444 = vadd.f32 %v444, %v1405
        %v1445 = vadd.f32 %v445, %v1211
        %v1446 = vadd.f32 %v446, %v1407
        %v1447 = vadd.f32 %v447, %v1214
        %v1448 = vadd.f32 %v448, %v1410
        %v1449 = vadd.f32 %v449, %v1216
        %v1450 = vadd.f32 %v450, %v1412
        %v1451 = vadd.f32 %v451, %v1219
        %v1452 = vadd.f32 %v452, %v1415
        %v1453 = vadd.f32 %v453, %v1221
        %v1454 = vadd.f32 %v454, %v1417
        %v1455 = vadd.f32 %v455, %v1224
        %v1456 = vadd.f32 %v456, %v1420
        %v1457 = vadd.f32 %v457, %v1226
        %v1458 = vadd.f32 %v458, %v1422
        %v1459 = vadd.f32 %v459, %v1229
        %v1460 = vadd.f32 %v460, %v1425
        %v1461 = vadd.f32 %v461, %v1231
        %v1462 = vadd.f32 %v462, %v1427
        %v1463 = vadd.f32 %v463, %v1234
        %v1464 = vadd.f32 %v464, %v1430
        %v1465 = vadd.f32 %v465, %v1236
        %v1466 = vadd.f32 %v466, %v1432
        %v1467 = vadd.f32 %v467, %v1239
        %v1468 = vadd.f32 %v468, %v1435
        %v1469 = vadd.f32 %v469, %v1241
        %v1470 = vadd.f32 %v470, %v1437
        %1471 = vst [vmem:[#allocation2] sm:$0xff] %v1439
        %1472 = vst [vmem:[#allocation2 + $0x8] sm:$0xff] %v1440
        %1473 = vst [vmem:[#allocation2 + $0x10] sm:$0xff] %v1441
        %1474 = vst [vmem:[#allocation2 + $0x18] sm:$0xff] %v1442
        %1475 = vst [vmem:[#allocation2 + $0x20] sm:$0xff] %v1443
        %1476 = vst [vmem:[#allocation2 + $0x28] sm:$0xff] %v1444
        %1477 = vst [vmem:[#allocation2 + $0x30] sm:$0xff] %v1445
        %1478 = vst [vmem:[#allocation2 + $0x38] sm:$0xff] %v1446
        %1479 = vst [vmem:[#allocation2 + $0x40] sm:$0xff] %v1447
        %1480 = vst [vmem:[#allocation2 + $0x48] sm:$0xff] %v1448
        %1481 = vst [vmem:[#allocation2 + $0x50] sm:$0xff] %v1449
        %1482 = vst [vmem:[#allocation2 + $0x58] sm:$0xff] %v1450
        %1483 = vst [vmem:[#allocation2 + $0x60] sm:$0xff] %v1451
        %1484 = vst [vmem:[#allocation2 + $0x68] sm:$0xff] %v1452
        %1485 = vst [vmem:[#allocation2 + $0x70] sm:$0xff] %v1453
        %1486 = vst [vmem:[#allocation2 + $0x78] sm:$0xff] %v1454
        %1487 = vst [vmem:[#allocation2 + $0x80] sm:$0xff] %v1455
        %1488 = vst [vmem:[#allocation2 + $0x88] sm:$0xff] %v1456
        %1489 = vst [vmem:[#allocation2 + $0x90] sm:$0xff] %v1457
        %1490 = vst [vmem:[#allocation2 + $0x98] sm:$0xff] %v1458
        %1491 = vst [vmem:[#allocation2 + $0xa0] sm:$0xff] %v1459
        %1492 = vst [vmem:[#allocation2 + $0xa8] sm:$0xff] %v1460
        %1493 = vst [vmem:[#allocation2 + $0xb0] sm:$0xff] %v1461
        %1494 = vst [vmem:[#allocation2 + $0xb8] sm:$0xff] %v1462
        %1495 = vst [vmem:[#allocation2 + $0xc0] sm:$0xff] %v1463
        %1496 = vst [vmem:[#allocation2 + $0xc8] sm:$0xff] %v1464
        %1497 = vst [vmem:[#allocation2 + $0xd0] sm:$0xff] %v1465
        %1498 = vst [vmem:[#allocation2 + $0xd8] sm:$0xff] %v1466
        %1499 = vst [vmem:[#allocation2 + $0xe0] sm:$0xff] %v1467
        %1500 = vst [vmem:[#allocation2 + $0xe8] sm:$0xff] %v1468
        %1501 = vst [vmem:[#allocation2 + $0xf0] sm:$0xff] %v1469
        %1502 = vst [vmem:[#allocation2 + $0xf8] sm:$0xff] %v1470
        // Predicated region
        $region65: #{tpu_custom_call.1} parent=39 // pred_check
          %p1503 = pneg %p403
        $region66: #{tpu_custom_call.1} parent=39 // pred_check_branch
          %1505 = sbr.rel (%p1503) target = $region68
        $region67: #{tpu_custom_call.1} parent=39 // pred_region
          %p1506 = scmp.lt.s32.totalorder %s30, 3
          // Predicated region
          $region69: #{tpu_custom_call.1} parent=67 // pred_check
            %p1507 = pneg %p1506
          $region70: #{tpu_custom_call.1} parent=67 // pred_check_branch
            %1509 = sbr.rel (%p1507) target = $region72
          $region71: #{tpu_custom_call.1} parent=67 // pred_region
            %v1510 = vld [vmem:[#allocation2] sm:$0xff]
            %v1511 = vld [vmem:[#allocation2 + $0x8] sm:$0xff]
            %v1512 = vld [vmem:[#allocation2 + $0x10] sm:$0xff]
            %v1513 = vld [vmem:[#allocation2 + $0x18] sm:$0xff]
            %v1514 = vld [vmem:[#allocation2 + $0x20] sm:$0xff]
            %v1515 = vld [vmem:[#allocation2 + $0x28] sm:$0xff]
            %v1516 = vld [vmem:[#allocation2 + $0x30] sm:$0xff]
            %v1517 = vld [vmem:[#allocation2 + $0x38] sm:$0xff]
            %v1518 = vld [vmem:[#allocation2 + $0x40] sm:$0xff]
            %v1519 = vld [vmem:[#allocation2 + $0x48] sm:$0xff]
            %v1520 = vld [vmem:[#allocation2 + $0x50] sm:$0xff]
            %v1521 = vld [vmem:[#allocation2 + $0x58] sm:$0xff]
            %v1522 = vld [vmem:[#allocation2 + $0x60] sm:$0xff]
            %v1523 = vld [vmem:[#allocation2 + $0x68] sm:$0xff]
            %v1524 = vld [vmem:[#allocation2 + $0x70] sm:$0xff]
            %v1525 = vld [vmem:[#allocation2 + $0x78] sm:$0xff]
            %v1526 = vld [vmem:[#allocation2 + $0x80] sm:$0xff]
            %v1527 = vld [vmem:[#allocation2 + $0x88] sm:$0xff]
            %v1528 = vld [vmem:[#allocation2 + $0x90] sm:$0xff]
            %v1529 = vld [vmem:[#allocation2 + $0x98] sm:$0xff]
            %v1530 = vld [vmem:[#allocation2 + $0xa0] sm:$0xff]
            %v1531 = vld [vmem:[#allocation2 + $0xa8] sm:$0xff]
            %v1532 = vld [vmem:[#allocation2 + $0xb0] sm:$0xff]
            %v1533 = vld [vmem:[#allocation2 + $0xb8] sm:$0xff]
            %v1534 = vld [vmem:[#allocation2 + $0xc0] sm:$0xff]
            %v1535 = vld [vmem:[#allocation2 + $0xc8] sm:$0xff]
            %v1536 = vld [vmem:[#allocation2 + $0xd0] sm:$0xff]
            %v1537 = vld [vmem:[#allocation2 + $0xd8] sm:$0xff]
            %v1538 = vld [vmem:[#allocation2 + $0xe0] sm:$0xff]
            %v1539 = vld [vmem:[#allocation2 + $0xe8] sm:$0xff]
            %v1540 = vld [vmem:[#allocation2 + $0xf0] sm:$0xff]
            %v1541 = vld [vmem:[#allocation2 + $0xf8] sm:$0xff]
            %v1542 = vld [vmem:[#allocation9] sm:$0xff]
            %v1543 = vld [vmem:[#allocation9 + $0x8] sm:$0xff]
            %v1544 = vld [vmem:[#allocation9 + $0x10] sm:$0xff]
            %v1545 = vld [vmem:[#allocation9 + $0x18] sm:$0xff]
            %v1546 = vld [vmem:[#allocation9 + $0x20] sm:$0xff]
            %v1547 = vld [vmem:[#allocation9 + $0x28] sm:$0xff]
            %v1548 = vld [vmem:[#allocation9 + $0x30] sm:$0xff]
            %v1549 = vld [vmem:[#allocation9 + $0x38] sm:$0xff]
            %v1550 = vld [vmem:[#allocation9 + $0x40] sm:$0xff]
            %v1551 = vld [vmem:[#allocation9 + $0x48] sm:$0xff]
            %v1552 = vld [vmem:[#allocation9 + $0x50] sm:$0xff]
            %v1553 = vld [vmem:[#allocation9 + $0x58] sm:$0xff]
            %v1554 = vld [vmem:[#allocation9 + $0x60] sm:$0xff]
            %v1555 = vld [vmem:[#allocation9 + $0x68] sm:$0xff]
            %v1556 = vld [vmem:[#allocation9 + $0x70] sm:$0xff]
            %v1557 = vld [vmem:[#allocation9 + $0x78] sm:$0xff]
            %v1558 = vld [vmem:[#allocation11] sm:$0xff]
            %v1559 = vld [vmem:[#allocation11 + $0x8] sm:$0xff]
            %v1560 = vld [vmem:[#allocation11 + $0x10] sm:$0xff]
            %v1561 = vld [vmem:[#allocation11 + $0x18] sm:$0xff]
            %v1562 = vld [vmem:[#allocation11 + $0x20] sm:$0xff]
            %v1563 = vld [vmem:[#allocation11 + $0x28] sm:$0xff]
            %v1564 = vld [vmem:[#allocation11 + $0x30] sm:$0xff]
            %v1565 = vld [vmem:[#allocation11 + $0x38] sm:$0xff]
            %v1566 = vld [vmem:[#allocation11 + $0x40] sm:$0xff]
            %v1567 = vld [vmem:[#allocation11 + $0x48] sm:$0xff]
            %v1568 = vld [vmem:[#allocation11 + $0x50] sm:$0xff]
            %v1569 = vld [vmem:[#allocation11 + $0x58] sm:$0xff]
            %v1570 = vld [vmem:[#allocation11 + $0x60] sm:$0xff]
            %v1571 = vld [vmem:[#allocation11 + $0x68] sm:$0xff]
            %v1572 = vld [vmem:[#allocation11 + $0x70] sm:$0xff]
            %v1573 = vld [vmem:[#allocation11 + $0x78] sm:$0xff]
            %v1574 = vld [vmem:[%s349] sm:$0x1]
            %v1575 = vmul.f32 %v1510, %v1510
            %v1576 = vmul.f32 %v1512, %v1512
            %v1577 = vmul.f32 %v1514, %v1514
            %v1578 = vmul.f32 %v1516, %v1516
            %v1579 = vmul.f32 %v1518, %v1518
            %v1580 = vmul.f32 %v1520, %v1520
            %v1581 = vmul.f32 %v1522, %v1522
            %v1582 = vmul.f32 %v1524, %v1524
            %v1583 = vmul.f32 %v1526, %v1526
            %v1584 = vmul.f32 %v1528, %v1528
            %v1585 = vmul.f32 %v1530, %v1530
            %v1586 = vmul.f32 %v1532, %v1532
            %v1587 = vmul.f32 %v1534, %v1534
            %v1588 = vmul.f32 %v1536, %v1536
            %v1589 = vmul.f32 %v1538, %v1538
            %v1590 = vmul.f32 %v1540, %v1540
            %1591 = vadd.xlane.f32.xlu0 %v1575
            %v1592 = vpop.xlane.xlu0 %1591
            %1593 = vadd.xlane.f32.xlu0 %v1576
            %v1594 = vpop.xlane.xlu0 %1593
            %1595 = vadd.xlane.f32.xlu0 %v1577
            %v1596 = vpop.xlane.xlu0 %1595
            %1597 = vadd.xlane.f32.xlu0 %v1578
            %v1598 = vpop.xlane.xlu0 %1597
            %1599 = vadd.xlane.f32.xlu0 %v1579
            %v1600 = vpop.xlane.xlu0 %1599
            %1601 = vadd.xlane.f32.xlu0 %v1580
            %v1602 = vpop.xlane.xlu0 %1601
            %1603 = vadd.xlane.f32.xlu0 %v1581
            %v1604 = vpop.xlane.xlu0 %1603
            %1605 = vadd.xlane.f32.xlu0 %v1582
            %v1606 = vpop.xlane.xlu0 %1605
            %1607 = vadd.xlane.f32.xlu0 %v1583
            %v1608 = vpop.xlane.xlu0 %1607
            %1609 = vadd.xlane.f32.xlu0 %v1584
            %v1610 = vpop.xlane.xlu0 %1609
            %1611 = vadd.xlane.f32.xlu0 %v1585
            %v1612 = vpop.xlane.xlu0 %1611
            %1613 = vadd.xlane.f32.xlu0 %v1586
            %v1614 = vpop.xlane.xlu0 %1613
            %1615 = vadd.xlane.f32.xlu0 %v1587
            %v1616 = vpop.xlane.xlu0 %1615
            %1617 = vadd.xlane.f32.xlu0 %v1588
            %v1618 = vpop.xlane.xlu0 %1617
            %1619 = vadd.xlane.f32.xlu0 %v1589
            %v1620 = vpop.xlane.xlu0 %1619
            %1621 = vadd.xlane.f32.xlu0 %v1590
            %v1622 = vpop.xlane.xlu0 %1621
            %v1623 = vrcp.pop 128.0
            %v1624 = vmul.f32 128.0, %v1623
            %v1625 = vsub.f32 1.0, %v1624
            %v1626 = vmul.f32 %v1623, %v1625
            %v1627 = vadd.f32 %v1623, %v1626
            %vm1628 = vweird.f32 %v1623
            %v1629 = vsel %vm1628, %v1623, %v1627
            %v1630 = vmul.f32 %v1592, %v1629
            %v1631 = vmul.f32 %v1594, %v1629
            %v1632 = vmul.f32 %v1596, %v1629
            %v1633 = vmul.f32 %v1598, %v1629
            %v1634 = vmul.f32 %v1600, %v1629
            %v1635 = vmul.f32 %v1602, %v1629
            %v1636 = vmul.f32 %v1604, %v1629
            %v1637 = vmul.f32 %v1606, %v1629
            %v1638 = vmul.f32 %v1608, %v1629
            %v1639 = vmul.f32 %v1610, %v1629
            %v1640 = vmul.f32 %v1612, %v1629
            %v1641 = vmul.f32 %v1614, %v1629
            %v1642 = vmul.f32 %v1616, %v1629
            %v1643 = vmul.f32 %v1618, %v1629
            %v1644 = vmul.f32 %v1620, %v1629
            %v1645 = vmul.f32 %v1622, %v1629
            %v1646 = vadd.f32 %v1630, 1e-06
            %v1647 = vadd.f32 %v1631, 1e-06
            %v1648 = vadd.f32 %v1632, 1e-06
            %v1649 = vadd.f32 %v1633, 1e-06
            %v1650 = vadd.f32 %v1634, 1e-06
            %v1651 = vadd.f32 %v1635, 1e-06
            %v1652 = vadd.f32 %v1636, 1e-06
            %v1653 = vadd.f32 %v1637, 1e-06
            %v1654 = vadd.f32 %v1638, 1e-06
            %v1655 = vadd.f32 %v1639, 1e-06
            %v1656 = vadd.f32 %v1640, 1e-06
            %v1657 = vadd.f32 %v1641, 1e-06
            %v1658 = vadd.f32 %v1642, 1e-06
            %v1659 = vadd.f32 %v1643, 1e-06
            %v1660 = vadd.f32 %v1644, 1e-06
            %v1661 = vadd.f32 %v1645, 1e-06
            %v1662 = vrsqrt.pop %v1646
            %v1663 = vmul.f32 %v1662, %v1646
            %v1664 = vmul.f32 %v1663, %v1662
            %v1665 = vmul.f32 0.5, %v1664
            %v1666 = vsub.f32 1.5, %v1665
            %v1667 = vmul.f32 %v1662, %v1666
            %vm1668 = vweird.f32 %v1646
            %vm1669 = vweird.f32 %v1662
            %vm1670 = vmor %vm1668, %vm1669
            %v1671 = vsel %vm1670, %v1662, %v1667
            %v1672 = vrsqrt.pop %v1647
            %v1673 = vmul.f32 %v1672, %v1647
            %v1674 = vmul.f32 %v1673, %v1672
            %v1675 = vmul.f32 0.5, %v1674
            %v1676 = vsub.f32 1.5, %v1675
            %v1677 = vmul.f32 %v1672, %v1676
            %vm1678 = vweird.f32 %v1647
            %vm1679 = vweird.f32 %v1672
            %vm1680 = vmor %vm1678, %vm1679
            %v1681 = vsel %vm1680, %v1672, %v1677
            %v1682 = vrsqrt.pop %v1648
            %v1683 = vmul.f32 %v1682, %v1648
            %v1684 = vmul.f32 %v1683, %v1682
            %v1685 = vmul.f32 0.5, %v1684
            %v1686 = vsub.f32 1.5, %v1685
            %v1687 = vmul.f32 %v1682, %v1686
            %vm1688 = vweird.f32 %v1648
            %vm1689 = vweird.f32 %v1682
            %vm1690 = vmor %vm1688, %vm1689
            %v1691 = vsel %vm1690, %v1682, %v1687
            %v1692 = vrsqrt.pop %v1649
            %v1693 = vmul.f32 %v1692, %v1649
            %v1694 = vmul.f32 %v1693, %v1692
            %v1695 = vmul.f32 0.5, %v1694
            %v1696 = vsub.f32 1.5, %v1695
            %v1697 = vmul.f32 %v1692, %v1696
            %vm1698 = vweird.f32 %v1649
            %vm1699 = vweird.f32 %v1692
            %vm1700 = vmor %vm1698, %vm1699
            %v1701 = vsel %vm1700, %v1692, %v1697
            %v1702 = vrsqrt.pop %v1650
            %v1703 = vmul.f32 %v1702, %v1650
            %v1704 = vmul.f32 %v1703, %v1702
            %v1705 = vmul.f32 0.5, %v1704
            %v1706 = vsub.f32 1.5, %v1705
            %v1707 = vmul.f32 %v1702, %v1706
            %vm1708 = vweird.f32 %v1650
            %vm1709 = vweird.f32 %v1702
            %vm1710 = vmor %vm1708, %vm1709
            %v1711 = vsel %vm1710, %v1702, %v1707
            %v1712 = vrsqrt.pop %v1651
            %v1713 = vmul.f32 %v1712, %v1651
            %v1714 = vmul.f32 %v1713, %v1712
            %v1715 = vmul.f32 0.5, %v1714
            %v1716 = vsub.f32 1.5, %v1715
            %v1717 = vmul.f32 %v1712, %v1716
            %vm1718 = vweird.f32 %v1651
            %vm1719 = vweird.f32 %v1712
            %vm1720 = vmor %vm1718, %vm1719
            %v1721 = vsel %vm1720, %v1712, %v1717
            %v1722 = vrsqrt.pop %v1652
            %v1723 = vmul.f32 %v1722, %v1652
            %v1724 = vmul.f32 %v1723, %v1722
            %v1725 = vmul.f32 0.5, %v1724
            %v1726 = vsub.f32 1.5, %v1725
            %v1727 = vmul.f32 %v1722, %v1726
            %vm1728 = vweird.f32 %v1652
            %vm1729 = vweird.f32 %v1722
            %vm1730 = vmor %vm1728, %vm1729
            %v1731 = vsel %vm1730, %v1722, %v1727
            %v1732 = vrsqrt.pop %v1653
            %v1733 = vmul.f32 %v1732, %v1653
            %v1734 = vmul.f32 %v1733, %v1732
            %v1735 = vmul.f32 0.5, %v1734
            %v1736 = vsub.f32 1.5, %v1735
            %v1737 = vmul.f32 %v1732, %v1736
            %vm1738 = vweird.f32 %v1653
            %vm1739 = vweird.f32 %v1732
            %vm1740 = vmor %vm1738, %vm1739
            %v1741 = vsel %vm1740, %v1732, %v1737
            %v1742 = vrsqrt.pop %v1654
            %v1743 = vmul.f32 %v1742, %v1654
            %v1744 = vmul.f32 %v1743, %v1742
            %v1745 = vmul.f32 0.5, %v1744
            %v1746 = vsub.f32 1.5, %v1745
            %v1747 = vmul.f32 %v1742, %v1746
            %vm1748 = vweird.f32 %v1654
            %vm1749 = vweird.f32 %v1742
            %vm1750 = vmor %vm1748, %vm1749
            %v1751 = vsel %vm1750, %v1742, %v1747
            %v1752 = vrsqrt.pop %v1655
            %v1753 = vmul.f32 %v1752, %v1655
            %v1754 = vmul.f32 %v1753, %v1752
            %v1755 = vmul.f32 0.5, %v1754
            %v1756 = vsub.f32 1.5, %v1755
            %v1757 = vmul.f32 %v1752, %v1756
            %vm1758 = vweird.f32 %v1655
            %vm1759 = vweird.f32 %v1752
            %vm1760 = vmor %vm1758, %vm1759
            %v1761 = vsel %vm1760, %v1752, %v1757
            %v1762 = vrsqrt.pop %v1656
            %v1763 = vmul.f32 %v1762, %v1656
            %v1764 = vmul.f32 %v1763, %v1762
            %v1765 = vmul.f32 0.5, %v1764
            %v1766 = vsub.f32 1.5, %v1765
            %v1767 = vmul.f32 %v1762, %v1766
            %vm1768 = vweird.f32 %v1656
            %vm1769 = vweird.f32 %v1762
            %vm1770 = vmor %vm1768, %vm1769
            %v1771 = vsel %vm1770, %v1762, %v1767
            %v1772 = vrsqrt.pop %v1657
            %v1773 = vmul.f32 %v1772, %v1657
            %v1774 = vmul.f32 %v1773, %v1772
            %v1775 = vmul.f32 0.5, %v1774
            %v1776 = vsub.f32 1.5, %v1775
            %v1777 = vmul.f32 %v1772, %v1776
            %vm1778 = vweird.f32 %v1657
            %vm1779 = vweird.f32 %v1772
            %vm1780 = vmor %vm1778, %vm1779
            %v1781 = vsel %vm1780, %v1772, %v1777
            %v1782 = vrsqrt.pop %v1658
            %v1783 = vmul.f32 %v1782, %v1658
            %v1784 = vmul.f32 %v1783, %v1782
            %v1785 = vmul.f32 0.5, %v1784
            %v1786 = vsub.f32 1.5, %v1785
            %v1787 = vmul.f32 %v1782, %v1786
            %vm1788 = vweird.f32 %v1658
            %vm1789 = vweird.f32 %v1782
            %vm1790 = vmor %vm1788, %vm1789
            %v1791 = vsel %vm1790, %v1782, %v1787
            %v1792 = vrsqrt.pop %v1659
            %v1793 = vmul.f32 %v1792, %v1659
            %v1794 = vmul.f32 %v1793, %v1792
            %v1795 = vmul.f32 0.5, %v1794
            %v1796 = vsub.f32 1.5, %v1795
            %v1797 = vmul.f32 %v1792, %v1796
            %vm1798 = vweird.f32 %v1659
            %vm1799 = vweird.f32 %v1792
            %vm1800 = vmor %vm1798, %vm1799
            %v1801 = vsel %vm1800, %v1792, %v1797
            %v1802 = vrsqrt.pop %v1660
            %v1803 = vmul.f32 %v1802, %v1660
            %v1804 = vmul.f32 %v1803, %v1802
            %v1805 = vmul.f32 0.5, %v1804
            %v1806 = vsub.f32 1.5, %v1805
            %v1807 = vmul.f32 %v1802, %v1806
            %vm1808 = vweird.f32 %v1660
            %vm1809 = vweird.f32 %v1802
            %vm1810 = vmor %vm1808, %vm1809
            %v1811 = vsel %vm1810, %v1802, %v1807
            %v1812 = vrsqrt.pop %v1661
            %v1813 = vmul.f32 %v1812, %v1661
            %v1814 = vmul.f32 %v1813, %v1812
            %v1815 = vmul.f32 0.5, %v1814
            %v1816 = vsub.f32 1.5, %v1815
            %v1817 = vmul.f32 %v1812, %v1816
            %vm1818 = vweird.f32 %v1661
            %vm1819 = vweird.f32 %v1812
            %vm1820 = vmor %vm1818, %vm1819
            %v1821 = vsel %vm1820, %v1812, %v1817
            %v1822 = vmul.f32 %v1510, %v1671
            %v1823 = vmul.f32 %v1512, %v1681
            %v1824 = vmul.f32 %v1514, %v1691
            %v1825 = vmul.f32 %v1516, %v1701
            %v1826 = vmul.f32 %v1518, %v1711
            %v1827 = vmul.f32 %v1520, %v1721
            %v1828 = vmul.f32 %v1522, %v1731
            %v1829 = vmul.f32 %v1524, %v1741
            %v1830 = vmul.f32 %v1526, %v1751
            %v1831 = vmul.f32 %v1528, %v1761
            %v1832 = vmul.f32 %v1530, %v1771
            %v1833 = vmul.f32 %v1532, %v1781
            %v1834 = vmul.f32 %v1534, %v1791
            %v1835 = vmul.f32 %v1536, %v1801
            %v1836 = vmul.f32 %v1538, %v1811
            %v1837 = vmul.f32 %v1540, %v1821
            %v1839 = vperm.slane %v1574, 0
            %v1841 = vmul.f32 %v1822, %v1839
            %v1842 = vmul.f32 %v1823, %v1839
            %v1843 = vmul.f32 %v1824, %v1839
            %v1844 = vmul.f32 %v1825, %v1839
            %v1845 = vmul.f32 %v1826, %v1839
            %v1846 = vmul.f32 %v1827, %v1839
            %v1847 = vmul.f32 %v1828, %v1839
            %v1848 = vmul.f32 %v1829, %v1839
            %v1849 = vmul.f32 %v1830, %v1839
            %v1850 = vmul.f32 %v1831, %v1839
            %v1851 = vmul.f32 %v1832, %v1839
            %v1852 = vmul.f32 %v1833, %v1839
            %v1853 = vmul.f32 %v1834, %v1839
            %v1854 = vmul.f32 %v1835, %v1839
            %v1855 = vmul.f32 %v1836, %v1839
            %v1856 = vmul.f32 %v1837, %v1839
            %1857 = vrot.lane.b32.xlu0 %v1841, 64
            %v1858 = vpop.permute.xlu0 %1857
            %1859 = vrot.lane.b32.xlu0 %v1842, 64
            %v1860 = vpop.permute.xlu0 %1859
            %1861 = vrot.lane.b32.xlu0 %v1843, 64
            %v1862 = vpop.permute.xlu0 %1861
            %1863 = vrot.lane.b32.xlu0 %v1844, 64
            %v1864 = vpop.permute.xlu0 %1863
            %1865 = vrot.lane.b32.xlu0 %v1845, 64
            %v1866 = vpop.permute.xlu0 %1865
            %1867 = vrot.lane.b32.xlu0 %v1846, 64
            %v1868 = vpop.permute.xlu0 %1867
            %1869 = vrot.lane.b32.xlu0 %v1847, 64
            %v1870 = vpop.permute.xlu0 %1869
            %1871 = vrot.lane.b32.xlu0 %v1848, 64
            %v1872 = vpop.permute.xlu0 %1871
            %1873 = vrot.lane.b32.xlu0 %v1849, 64
            %v1874 = vpop.permute.xlu0 %1873
            %1875 = vrot.lane.b32.xlu0 %v1850, 64
            %v1876 = vpop.permute.xlu0 %1875
            %1877 = vrot.lane.b32.xlu0 %v1851, 64
            %v1878 = vpop.permute.xlu0 %1877
            %1879 = vrot.lane.b32.xlu0 %v1852, 64
            %v1880 = vpop.permute.xlu0 %1879
            %1881 = vrot.lane.b32.xlu0 %v1853, 64
            %v1882 = vpop.permute.xlu0 %1881
            %1883 = vrot.lane.b32.xlu0 %v1854, 64
            %v1884 = vpop.permute.xlu0 %1883
            %1885 = vrot.lane.b32.xlu0 %v1855, 64
            %v1886 = vpop.permute.xlu0 %1885
            %1887 = vrot.lane.b32.xlu0 %v1856, 64
            %v1888 = vpop.permute.xlu0 %1887
            %v1889 = vmul.f32 %v1841, %v1542
            %v1890 = vmul.f32 %v1842, %v1543
            %v1891 = vmul.f32 %v1843, %v1544
            %v1892 = vmul.f32 %v1844, %v1545
            %v1893 = vmul.f32 %v1845, %v1546
            %v1894 = vmul.f32 %v1846, %v1547
            %v1895 = vmul.f32 %v1847, %v1548
            %v1896 = vmul.f32 %v1848, %v1549
            %v1897 = vmul.f32 %v1849, %v1550
            %v1898 = vmul.f32 %v1850, %v1551
            %v1899 = vmul.f32 %v1851, %v1552
            %v1900 = vmul.f32 %v1852, %v1553
            %v1901 = vmul.f32 %v1853, %v1554
            %v1902 = vmul.f32 %v1854, %v1555
            %v1903 = vmul.f32 %v1855, %v1556
            %v1904 = vmul.f32 %v1856, %v1557
            %v1905 = vmul.f32 %v1858, %v1558
            %v1906 = vmul.f32 %v1860, %v1559
            %v1907 = vmul.f32 %v1862, %v1560
            %v1908 = vmul.f32 %v1864, %v1561
            %v1909 = vmul.f32 %v1866, %v1562
            %v1910 = vmul.f32 %v1868, %v1563
            %v1911 = vmul.f32 %v1870, %v1564
            %v1912 = vmul.f32 %v1872, %v1565
            %v1913 = vmul.f32 %v1874, %v1566
            %v1914 = vmul.f32 %v1876, %v1567
            %v1915 = vmul.f32 %v1878, %v1568
            %v1916 = vmul.f32 %v1880, %v1569
            %v1917 = vmul.f32 %v1882, %v1570
            %v1918 = vmul.f32 %v1884, %v1571
            %v1919 = vmul.f32 %v1886, %v1572
            %v1920 = vmul.f32 %v1888, %v1573
            %v1921 = vadd.f32 %v1889, %v1905
            %v1922 = vadd.f32 %v1890, %v1906
            %v1923 = vadd.f32 %v1891, %v1907
            %v1924 = vadd.f32 %v1892, %v1908
            %v1925 = vadd.f32 %v1893, %v1909
            %v1926 = vadd.f32 %v1894, %v1910
            %v1927 = vadd.f32 %v1895, %v1911
            %v1928 = vadd.f32 %v1896, %v1912
            %v1929 = vadd.f32 %v1897, %v1913
            %v1930 = vadd.f32 %v1898, %v1914
            %v1931 = vadd.f32 %v1899, %v1915
            %v1932 = vadd.f32 %v1900, %v1916
            %v1933 = vadd.f32 %v1901, %v1917
            %v1934 = vadd.f32 %v1902, %v1918
            %v1935 = vadd.f32 %v1903, %v1919
            %v1936 = vadd.f32 %v1904, %v1920
            %v1937 = vld [vmem:[%s349 + $0x1] sm:$0x1]
            %v1938 = vmul.f32 %v1511, %v1511
            %v1939 = vmul.f32 %v1513, %v1513
            %v1940 = vmul.f32 %v1515, %v1515
            %v1941 = vmul.f32 %v1517, %v1517
            %v1942 = vmul.f32 %v1519, %v1519
            %v1943 = vmul.f32 %v1521, %v1521
            %v1944 = vmul.f32 %v1523, %v1523
            %v1945 = vmul.f32 %v1525, %v1525
            %v1946 = vmul.f32 %v1527, %v1527
            %v1947 = vmul.f32 %v1529, %v1529
            %v1948 = vmul.f32 %v1531, %v1531
            %v1949 = vmul.f32 %v1533, %v1533
            %v1950 = vmul.f32 %v1535, %v1535
            %v1951 = vmul.f32 %v1537, %v1537
            %v1952 = vmul.f32 %v1539, %v1539
            %v1953 = vmul.f32 %v1541, %v1541
            %1954 = vadd.xlane.f32.xlu0 %v1938
            %v1955 = vpop.xlane.xlu0 %1954
            %1956 = vadd.xlane.f32.xlu0 %v1939
            %v1957 = vpop.xlane.xlu0 %1956
            %1958 = vadd.xlane.f32.xlu0 %v1940
            %v1959 = vpop.xlane.xlu0 %1958
            %1960 = vadd.xlane.f32.xlu0 %v1941
            %v1961 = vpop.xlane.xlu0 %1960
            %1962 = vadd.xlane.f32.xlu0 %v1942
            %v1963 = vpop.xlane.xlu0 %1962
            %1964 = vadd.xlane.f32.xlu0 %v1943
            %v1965 = vpop.xlane.xlu0 %1964
            %1966 = vadd.xlane.f32.xlu0 %v1944
            %v1967 = vpop.xlane.xlu0 %1966
            %1968 = vadd.xlane.f32.xlu0 %v1945
            %v1969 = vpop.xlane.xlu0 %1968
            %1970 = vadd.xlane.f32.xlu0 %v1946
            %v1971 = vpop.xlane.xlu0 %1970
            %1972 = vadd.xlane.f32.xlu0 %v1947
            %v1973 = vpop.xlane.xlu0 %1972
            %1974 = vadd.xlane.f32.xlu0 %v1948
            %v1975 = vpop.xlane.xlu0 %1974
            %1976 = vadd.xlane.f32.xlu0 %v1949
            %v1977 = vpop.xlane.xlu0 %1976
            %1978 = vadd.xlane.f32.xlu0 %v1950
            %v1979 = vpop.xlane.xlu0 %1978
            %1980 = vadd.xlane.f32.xlu0 %v1951
            %v1981 = vpop.xlane.xlu0 %1980
            %1982 = vadd.xlane.f32.xlu0 %v1952
            %v1983 = vpop.xlane.xlu0 %1982
            %1984 = vadd.xlane.f32.xlu0 %v1953
            %v1985 = vpop.xlane.xlu0 %1984
            %v1986 = vmul.f32 %v1955, %v1629
            %v1987 = vmul.f32 %v1957, %v1629
            %v1988 = vmul.f32 %v1959, %v1629
            %v1989 = vmul.f32 %v1961, %v1629
            %v1990 = vmul.f32 %v1963, %v1629
            %v1991 = vmul.f32 %v1965, %v1629
            %v1992 = vmul.f32 %v1967, %v1629
            %v1993 = vmul.f32 %v1969, %v1629
            %v1994 = vmul.f32 %v1971, %v1629
            %v1995 = vmul.f32 %v1973, %v1629
            %v1996 = vmul.f32 %v1975, %v1629
            %v1997 = vmul.f32 %v1977, %v1629
            %v1998 = vmul.f32 %v1979, %v1629
            %v1999 = vmul.f32 %v1981, %v1629
            %v2000 = vmul.f32 %v1983, %v1629
            %v2001 = vmul.f32 %v1985, %v1629
            %v2002 = vadd.f32 %v1986, 1e-06
            %v2003 = vadd.f32 %v1987, 1e-06
            %v2004 = vadd.f32 %v1988, 1e-06
            %v2005 = vadd.f32 %v1989, 1e-06
            %v2006 = vadd.f32 %v1990, 1e-06
            %v2007 = vadd.f32 %v1991, 1e-06
            %v2008 = vadd.f32 %v1992, 1e-06
            %v2009 = vadd.f32 %v1993, 1e-06
            %v2010 = vadd.f32 %v1994, 1e-06
            %v2011 = vadd.f32 %v1995, 1e-06
            %v2012 = vadd.f32 %v1996, 1e-06
            %v2013 = vadd.f32 %v1997, 1e-06
            %v2014 = vadd.f32 %v1998, 1e-06
            %v2015 = vadd.f32 %v1999, 1e-06
            %v2016 = vadd.f32 %v2000, 1e-06
            %v2017 = vadd.f32 %v2001, 1e-06
            %v2018 = vrsqrt.pop %v2002
            %v2019 = vmul.f32 %v2018, %v2002
            %v2020 = vmul.f32 %v2019, %v2018
            %v2021 = vmul.f32 0.5, %v2020
            %v2022 = vsub.f32 1.5, %v2021
            %v2023 = vmul.f32 %v2018, %v2022
            %vm2024 = vweird.f32 %v2002
            %vm2025 = vweird.f32 %v2018
            %vm2026 = vmor %vm2024, %vm2025
            %v2027 = vsel %vm2026, %v2018, %v2023
            %v2028 = vrsqrt.pop %v2003
            %v2029 = vmul.f32 %v2028, %v2003
            %v2030 = vmul.f32 %v2029, %v2028
            %v2031 = vmul.f32 0.5, %v2030
            %v2032 = vsub.f32 1.5, %v2031
            %v2033 = vmul.f32 %v2028, %v2032
            %vm2034 = vweird.f32 %v2003
            %vm2035 = vweird.f32 %v2028
            %vm2036 = vmor %vm2034, %vm2035
            %v2037 = vsel %vm2036, %v2028, %v2033
            %v2038 = vrsqrt.pop %v2004
            %v2039 = vmul.f32 %v2038, %v2004
            %v2040 = vmul.f32 %v2039, %v2038
            %v2041 = vmul.f32 0.5, %v2040
            %v2042 = vsub.f32 1.5, %v2041
            %v2043 = vmul.f32 %v2038, %v2042
            %vm2044 = vweird.f32 %v2004
            %vm2045 = vweird.f32 %v2038
            %vm2046 = vmor %vm2044, %vm2045
            %v2047 = vsel %vm2046, %v2038, %v2043
            %v2048 = vrsqrt.pop %v2005
            %v2049 = vmul.f32 %v2048, %v2005
            %v2050 = vmul.f32 %v2049, %v2048
            %v2051 = vmul.f32 0.5, %v2050
            %v2052 = vsub.f32 1.5, %v2051
            %v2053 = vmul.f32 %v2048, %v2052
            %vm2054 = vweird.f32 %v2005
            %vm2055 = vweird.f32 %v2048
            %vm2056 = vmor %vm2054, %vm2055
            %v2057 = vsel %vm2056, %v2048, %v2053
            %v2058 = vrsqrt.pop %v2006
            %v2059 = vmul.f32 %v2058, %v2006
            %v2060 = vmul.f32 %v2059, %v2058
            %v2061 = vmul.f32 0.5, %v2060
            %v2062 = vsub.f32 1.5, %v2061
            %v2063 = vmul.f32 %v2058, %v2062
            %vm2064 = vweird.f32 %v2006
            %vm2065 = vweird.f32 %v2058
            %vm2066 = vmor %vm2064, %vm2065
            %v2067 = vsel %vm2066, %v2058, %v2063
            %v2068 = vrsqrt.pop %v2007
            %v2069 = vmul.f32 %v2068, %v2007
            %v2070 = vmul.f32 %v2069, %v2068
            %v2071 = vmul.f32 0.5, %v2070
            %v2072 = vsub.f32 1.5, %v2071
            %v2073 = vmul.f32 %v2068, %v2072
            %vm2074 = vweird.f32 %v2007
            %vm2075 = vweird.f32 %v2068
            %vm2076 = vmor %vm2074, %vm2075
            %v2077 = vsel %vm2076, %v2068, %v2073
            %v2078 = vrsqrt.pop %v2008
            %v2079 = vmul.f32 %v2078, %v2008
            %v2080 = vmul.f32 %v2079, %v2078
            %v2081 = vmul.f32 0.5, %v2080
            %v2082 = vsub.f32 1.5, %v2081
            %v2083 = vmul.f32 %v2078, %v2082
            %vm2084 = vweird.f32 %v2008
            %vm2085 = vweird.f32 %v2078
            %vm2086 = vmor %vm2084, %vm2085
            %v2087 = vsel %vm2086, %v2078, %v2083
            %v2088 = vrsqrt.pop %v2009
            %v2089 = vmul.f32 %v2088, %v2009
            %v2090 = vmul.f32 %v2089, %v2088
            %v2091 = vmul.f32 0.5, %v2090
            %v2092 = vsub.f32 1.5, %v2091
            %v2093 = vmul.f32 %v2088, %v2092
            %vm2094 = vweird.f32 %v2009
            %vm2095 = vweird.f32 %v2088
            %vm2096 = vmor %vm2094, %vm2095
            %v2097 = vsel %vm2096, %v2088, %v2093
            %v2098 = vrsqrt.pop %v2010
            %v2099 = vmul.f32 %v2098, %v2010
            %v2100 = vmul.f32 %v2099, %v2098
            %v2101 = vmul.f32 0.5, %v2100
            %v2102 = vsub.f32 1.5, %v2101
            %v2103 = vmul.f32 %v2098, %v2102
            %vm2104 = vweird.f32 %v2010
            %vm2105 = vweird.f32 %v2098
            %vm2106 = vmor %vm2104, %vm2105
            %v2107 = vsel %vm2106, %v2098, %v2103
            %v2108 = vrsqrt.pop %v2011
            %v2109 = vmul.f32 %v2108, %v2011
            %v2110 = vmul.f32 %v2109, %v2108
            %v2111 = vmul.f32 0.5, %v2110
            %v2112 = vsub.f32 1.5, %v2111
            %v2113 = vmul.f32 %v2108, %v2112
            %vm2114 = vweird.f32 %v2011
            %vm2115 = vweird.f32 %v2108
            %vm2116 = vmor %vm2114, %vm2115
            %v2117 = vsel %vm2116, %v2108, %v2113
            %v2118 = vrsqrt.pop %v2012
            %v2119 = vmul.f32 %v2118, %v2012
            %v2120 = vmul.f32 %v2119, %v2118
            %v2121 = vmul.f32 0.5, %v2120
            %v2122 = vsub.f32 1.5, %v2121
            %v2123 = vmul.f32 %v2118, %v2122
            %vm2124 = vweird.f32 %v2012
            %vm2125 = vweird.f32 %v2118
            %vm2126 = vmor %vm2124, %vm2125
            %v2127 = vsel %vm2126, %v2118, %v2123
            %v2128 = vrsqrt.pop %v2013
            %v2129 = vmul.f32 %v2128, %v2013
            %v2130 = vmul.f32 %v2129, %v2128
            %v2131 = vmul.f32 0.5, %v2130
            %v2132 = vsub.f32 1.5, %v2131
            %v2133 = vmul.f32 %v2128, %v2132
            %vm2134 = vweird.f32 %v2013
            %vm2135 = vweird.f32 %v2128
            %vm2136 = vmor %vm2134, %vm2135
            %v2137 = vsel %vm2136, %v2128, %v2133
            %v2138 = vrsqrt.pop %v2014
            %v2139 = vmul.f32 %v2138, %v2014
            %v2140 = vmul.f32 %v2139, %v2138
            %v2141 = vmul.f32 0.5, %v2140
            %v2142 = vsub.f32 1.5, %v2141
            %v2143 = vmul.f32 %v2138, %v2142
            %vm2144 = vweird.f32 %v2014
            %vm2145 = vweird.f32 %v2138
            %vm2146 = vmor %vm2144, %vm2145
            %v2147 = vsel %vm2146, %v2138, %v2143
            %v2148 = vrsqrt.pop %v2015
            %v2149 = vmul.f32 %v2148, %v2015
            %v2150 = vmul.f32 %v2149, %v2148
            %v2151 = vmul.f32 0.5, %v2150
            %v2152 = vsub.f32 1.5, %v2151
            %v2153 = vmul.f32 %v2148, %v2152
            %vm2154 = vweird.f32 %v2015
            %vm2155 = vweird.f32 %v2148
            %vm2156 = vmor %vm2154, %vm2155
            %v2157 = vsel %vm2156, %v2148, %v2153
            %v2158 = vrsqrt.pop %v2016
            %v2159 = vmul.f32 %v2158, %v2016
            %v2160 = vmul.f32 %v2159, %v2158
            %v2161 = vmul.f32 0.5, %v2160
            %v2162 = vsub.f32 1.5, %v2161
            %v2163 = vmul.f32 %v2158, %v2162
            %vm2164 = vweird.f32 %v2016
            %vm2165 = vweird.f32 %v2158
            %vm2166 = vmor %vm2164, %vm2165
            %v2167 = vsel %vm2166, %v2158, %v2163
            %v2168 = vrsqrt.pop %v2017
            %v2169 = vmul.f32 %v2168, %v2017
            %v2170 = vmul.f32 %v2169, %v2168
            %v2171 = vmul.f32 0.5, %v2170
            %v2172 = vsub.f32 1.5, %v2171
            %v2173 = vmul.f32 %v2168, %v2172
            %vm2174 = vweird.f32 %v2017
            %vm2175 = vweird.f32 %v2168
            %vm2176 = vmor %vm2174, %vm2175
            %v2177 = vsel %vm2176, %v2168, %v2173
            %v2178 = vmul.f32 %v1511, %v2027
            %v2179 = vmul.f32 %v1513, %v2037
            %v2180 = vmul.f32 %v1515, %v2047
            %v2181 = vmul.f32 %v1517, %v2057
            %v2182 = vmul.f32 %v1519, %v2067
            %v2183 = vmul.f32 %v1521, %v2077
            %v2184 = vmul.f32 %v1523, %v2087
            %v2185 = vmul.f32 %v1525, %v2097
            %v2186 = vmul.f32 %v1527, %v2107
            %v2187 = vmul.f32 %v1529, %v2117
            %v2188 = vmul.f32 %v1531, %v2127
            %v2189 = vmul.f32 %v1533, %v2137
            %v2190 = vmul.f32 %v1535, %v2147
            %v2191 = vmul.f32 %v1537, %v2157
            %v2192 = vmul.f32 %v1539, %v2167
            %v2193 = vmul.f32 %v1541, %v2177
            %v2195 = vperm.slane %v1937, 0
            %v2197 = vmul.f32 %v2178, %v2195
            %v2198 = vmul.f32 %v2179, %v2195
            %v2199 = vmul.f32 %v2180, %v2195
            %v2200 = vmul.f32 %v2181, %v2195
            %v2201 = vmul.f32 %v2182, %v2195
            %v2202 = vmul.f32 %v2183, %v2195
            %v2203 = vmul.f32 %v2184, %v2195
            %v2204 = vmul.f32 %v2185, %v2195
            %v2205 = vmul.f32 %v2186, %v2195
            %v2206 = vmul.f32 %v2187, %v2195
            %v2207 = vmul.f32 %v2188, %v2195
            %v2208 = vmul.f32 %v2189, %v2195
            %v2209 = vmul.f32 %v2190, %v2195
            %v2210 = vmul.f32 %v2191, %v2195
            %v2211 = vmul.f32 %v2192, %v2195
            %v2212 = vmul.f32 %v2193, %v2195
            %2213 = vrot.lane.b32.xlu0 %v2197, 64
            %v2214 = vpop.permute.xlu0 %2213
            %2215 = vrot.lane.b32.xlu0 %v2198, 64
            %v2216 = vpop.permute.xlu0 %2215
            %2217 = vrot.lane.b32.xlu0 %v2199, 64
            %v2218 = vpop.permute.xlu0 %2217
            %2219 = vrot.lane.b32.xlu0 %v2200, 64
            %v2220 = vpop.permute.xlu0 %2219
            %2221 = vrot.lane.b32.xlu0 %v2201, 64
            %v2222 = vpop.permute.xlu0 %2221
            %2223 = vrot.lane.b32.xlu0 %v2202, 64
            %v2224 = vpop.permute.xlu0 %2223
            %2225 = vrot.lane.b32.xlu0 %v2203, 64
            %v2226 = vpop.permute.xlu0 %2225
            %2227 = vrot.lane.b32.xlu0 %v2204, 64
            %v2228 = vpop.permute.xlu0 %2227
            %2229 = vrot.lane.b32.xlu0 %v2205, 64
            %v2230 = vpop.permute.xlu0 %2229
            %2231 = vrot.lane.b32.xlu0 %v2206, 64
            %v2232 = vpop.permute.xlu0 %2231
            %2233 = vrot.lane.b32.xlu0 %v2207, 64
            %v2234 = vpop.permute.xlu0 %2233
            %2235 = vrot.lane.b32.xlu0 %v2208, 64
            %v2236 = vpop.permute.xlu0 %2235
            %2237 = vrot.lane.b32.xlu0 %v2209, 64
            %v2238 = vpop.permute.xlu0 %2237
            %2239 = vrot.lane.b32.xlu0 %v2210, 64
            %v2240 = vpop.permute.xlu0 %2239
            %2241 = vrot.lane.b32.xlu0 %v2211, 64
            %v2242 = vpop.permute.xlu0 %2241
            %2243 = vrot.lane.b32.xlu0 %v2212, 64
            %v2244 = vpop.permute.xlu0 %2243
            %v2245 = vmul.f32 %v2197, %v1542
            %v2246 = vmul.f32 %v2198, %v1543
            %v2247 = vmul.f32 %v2199, %v1544
            %v2248 = vmul.f32 %v2200, %v1545
            %v2249 = vmul.f32 %v2201, %v1546
            %v2250 = vmul.f32 %v2202, %v1547
            %v2251 = vmul.f32 %v2203, %v1548
            %v2252 = vmul.f32 %v2204, %v1549
            %v2253 = vmul.f32 %v2205, %v1550
            %v2254 = vmul.f32 %v2206, %v1551
            %v2255 = vmul.f32 %v2207, %v1552
            %v2256 = vmul.f32 %v2208, %v1553
            %v2257 = vmul.f32 %v2209, %v1554
            %v2258 = vmul.f32 %v2210, %v1555
            %v2259 = vmul.f32 %v2211, %v1556
            %v2260 = vmul.f32 %v2212, %v1557
            %v2261 = vmul.f32 %v2214, %v1558
            %v2262 = vmul.f32 %v2216, %v1559
            %v2263 = vmul.f32 %v2218, %v1560
            %v2264 = vmul.f32 %v2220, %v1561
            %v2265 = vmul.f32 %v2222, %v1562
            %v2266 = vmul.f32 %v2224, %v1563
            %v2267 = vmul.f32 %v2226, %v1564
            %v2268 = vmul.f32 %v2228, %v1565
            %v2269 = vmul.f32 %v2230, %v1566
            %v2270 = vmul.f32 %v2232, %v1567
            %v2271 = vmul.f32 %v2234, %v1568
            %v2272 = vmul.f32 %v2236, %v1569
            %v2273 = vmul.f32 %v2238, %v1570
            %v2274 = vmul.f32 %v2240, %v1571
            %v2275 = vmul.f32 %v2242, %v1572
            %v2276 = vmul.f32 %v2244, %v1573
            %v2277 = vadd.f32 %v2245, %v2261
            %v2278 = vadd.f32 %v2246, %v2262
            %v2279 = vadd.f32 %v2247, %v2263
            %v2280 = vadd.f32 %v2248, %v2264
            %v2281 = vadd.f32 %v2249, %v2265
            %v2282 = vadd.f32 %v2250, %v2266
            %v2283 = vadd.f32 %v2251, %v2267
            %v2284 = vadd.f32 %v2252, %v2268
            %v2285 = vadd.f32 %v2253, %v2269
            %v2286 = vadd.f32 %v2254, %v2270
            %v2287 = vadd.f32 %v2255, %v2271
            %v2288 = vadd.f32 %v2256, %v2272
            %v2289 = vadd.f32 %v2257, %v2273
            %v2290 = vadd.f32 %v2258, %v2274
            %v2291 = vadd.f32 %v2259, %v2275
            %v2292 = vadd.f32 %v2260, %v2276
            %v2293 = vpack.c.bf16 %v2277, %v1921
            %v2294 = vpack.c.bf16 %v2278, %v1922
            %v2295 = vpack.c.bf16 %v2279, %v1923
            %v2296 = vpack.c.bf16 %v2280, %v1924
            %v2297 = vpack.c.bf16 %v2281, %v1925
            %v2298 = vpack.c.bf16 %v2282, %v1926
            %v2299 = vpack.c.bf16 %v2283, %v1927
            %v2300 = vpack.c.bf16 %v2284, %v1928
            %v2301 = vpack.c.bf16 %v2285, %v1929
            %v2302 = vpack.c.bf16 %v2286, %v1930
            %v2303 = vpack.c.bf16 %v2287, %v1931
            %v2304 = vpack.c.bf16 %v2288, %v1932
            %v2305 = vpack.c.bf16 %v2289, %v1933
            %v2306 = vpack.c.bf16 %v2290, %v1934
            %v2307 = vpack.c.bf16 %v2291, %v1935
            %v2308 = vpack.c.bf16 %v2292, %v1936
            %2309 = vst [vmem:[%s391] sm:$0xff] %v2293
            %2310 = vst [vmem:[%s391 + $0x8] sm:$0xff] %v2294
            %2311 = vst [vmem:[%s391 + $0x10] sm:$0xff] %v2295
            %2312 = vst [vmem:[%s391 + $0x18] sm:$0xff] %v2296
            %2313 = vst [vmem:[%s391 + $0x20] sm:$0xff] %v2297
            %2314 = vst [vmem:[%s391 + $0x28] sm:$0xff] %v2298
            %2315 = vst [vmem:[%s391 + $0x30] sm:$0xff] %v2299
            %2316 = vst [vmem:[%s391 + $0x38] sm:$0xff] %v2300
            %2317 = vst [vmem:[%s391 + $0x40] sm:$0xff] %v2301
            %2318 = vst [vmem:[%s391 + $0x48] sm:$0xff] %v2302
            %2319 = vst [vmem:[%s391 + $0x50] sm:$0xff] %v2303
            %2320 = vst [vmem:[%s391 + $0x58] sm:$0xff] %v2304
            %2321 = vst [vmem:[%s391 + $0x60] sm:$0xff] %v2305
            %2322 = vst [vmem:[%s391 + $0x68] sm:$0xff] %v2306
            %2323 = vst [vmem:[%s391 + $0x70] sm:$0xff] %v2307
            %2324 = vst [vmem:[%s391 + $0x78] sm:$0xff] %v2308
          $region72: #{tpu_custom_call.1} parent=67 // pred_fallthru
            _
          %p2325 = scmp.ge.s32.totalorder %s30, 3
          // Predicated region
          $region73: #{tpu_custom_call.1} parent=67 // pred_check
            %p2326 = pneg %p2325
          $region74: #{tpu_custom_call.1} parent=67 // pred_check_branch
            %2328 = sbr.rel (%p2326) target = $region76
          $region75: #{tpu_custom_call.1} parent=67 // pred_region
            %v2329 = vld [vmem:[#allocation2] sm:$0xff]
            %v2330 = vld [vmem:[#allocation2 + $0x8] sm:$0xff]
            %v2331 = vld [vmem:[#allocation2 + $0x10] sm:$0xff]
            %v2332 = vld [vmem:[#allocation2 + $0x18] sm:$0xff]
            %v2333 = vld [vmem:[#allocation2 + $0x20] sm:$0xff]
            %v2334 = vld [vmem:[#allocation2 + $0x28] sm:$0xff]
            %v2335 = vld [vmem:[#allocation2 + $0x30] sm:$0xff]
            %v2336 = vld [vmem:[#allocation2 + $0x38] sm:$0xff]
            %v2337 = vld [vmem:[#allocation2 + $0x40] sm:$0xff]
            %v2338 = vld [vmem:[#allocation2 + $0x48] sm:$0xff]
            %v2339 = vld [vmem:[#allocation2 + $0x50] sm:$0xff]
            %v2340 = vld [vmem:[#allocation2 + $0x58] sm:$0xff]
            %v2341 = vld [vmem:[#allocation2 + $0x60] sm:$0xff]
            %v2342 = vld [vmem:[#allocation2 + $0x68] sm:$0xff]
            %v2343 = vld [vmem:[#allocation2 + $0x70] sm:$0xff]
            %v2344 = vld [vmem:[#allocation2 + $0x78] sm:$0xff]
            %v2345 = vld [vmem:[#allocation2 + $0x80] sm:$0xff]
            %v2346 = vld [vmem:[#allocation2 + $0x88] sm:$0xff]
            %v2347 = vld [vmem:[#allocation2 + $0x90] sm:$0xff]
            %v2348 = vld [vmem:[#allocation2 + $0x98] sm:$0xff]
            %v2349 = vld [vmem:[#allocation2 + $0xa0] sm:$0xff]
            %v2350 = vld [vmem:[#allocation2 + $0xa8] sm:$0xff]
            %v2351 = vld [vmem:[#allocation2 + $0xb0] sm:$0xff]
            %v2352 = vld [vmem:[#allocation2 + $0xb8] sm:$0xff]
            %v2353 = vld [vmem:[#allocation2 + $0xc0] sm:$0xff]
            %v2354 = vld [vmem:[#allocation2 + $0xc8] sm:$0xff]
            %v2355 = vld [vmem:[#allocation2 + $0xd0] sm:$0xff]
            %v2356 = vld [vmem:[#allocation2 + $0xd8] sm:$0xff]
            %v2357 = vld [vmem:[#allocation2 + $0xe0] sm:$0xff]
            %v2358 = vld [vmem:[#allocation2 + $0xe8] sm:$0xff]
            %v2359 = vld [vmem:[#allocation2 + $0xf0] sm:$0xff]
            %v2360 = vld [vmem:[#allocation2 + $0xf8] sm:$0xff]
            %v2361 = vpack.c.bf16 %v2330, %v2329
            %v2362 = vpack.c.bf16 %v2332, %v2331
            %v2363 = vpack.c.bf16 %v2334, %v2333
            %v2364 = vpack.c.bf16 %v2336, %v2335
            %v2365 = vpack.c.bf16 %v2338, %v2337
            %v2366 = vpack.c.bf16 %v2340, %v2339
            %v2367 = vpack.c.bf16 %v2342, %v2341
            %v2368 = vpack.c.bf16 %v2344, %v2343
            %v2369 = vpack.c.bf16 %v2346, %v2345
            %v2370 = vpack.c.bf16 %v2348, %v2347
            %v2371 = vpack.c.bf16 %v2350, %v2349
            %v2372 = vpack.c.bf16 %v2352, %v2351
            %v2373 = vpack.c.bf16 %v2354, %v2353
            %v2374 = vpack.c.bf16 %v2356, %v2355
            %v2375 = vpack.c.bf16 %v2358, %v2357
            %v2376 = vpack.c.bf16 %v2360, %v2359
            %2377 = vst [vmem:[%s391] sm:$0xff] %v2361
            %2378 = vst [vmem:[%s391 + $0x8] sm:$0xff] %v2362
            %2379 = vst [vmem:[%s391 + $0x10] sm:$0xff] %v2363
            %2380 = vst [vmem:[%s391 + $0x18] sm:$0xff] %v2364
            %2381 = vst [vmem:[%s391 + $0x20] sm:$0xff] %v2365
            %2382 = vst [vmem:[%s391 + $0x28] sm:$0xff] %v2366
            %2383 = vst [vmem:[%s391 + $0x30] sm:$0xff] %v2367
            %2384 = vst [vmem:[%s391 + $0x38] sm:$0xff] %v2368
            %2385 = vst [vmem:[%s391 + $0x40] sm:$0xff] %v2369
            %2386 = vst [vmem:[%s391 + $0x48] sm:$0xff] %v2370
            %2387 = vst [vmem:[%s391 + $0x50] sm:$0xff] %v2371
            %2388 = vst [vmem:[%s391 + $0x58] sm:$0xff] %v2372
            %2389 = vst [vmem:[%s391 + $0x60] sm:$0xff] %v2373
            %2390 = vst [vmem:[%s391 + $0x68] sm:$0xff] %v2374
            %2391 = vst [vmem:[%s391 + $0x70] sm:$0xff] %v2375
            %2392 = vst [vmem:[%s391 + $0x78] sm:$0xff] %v2376
          $region76: #{tpu_custom_call.1} parent=67 // pred_fallthru
            _
        $region68: #{tpu_custom_call.1} parent=39 // pred_fallthru
          _
        %s2393 = sand.u32 %s191, 1
        %s2394 = scalar_lea.sflag [#allocation5], %s2393
        %s2395 = sand.u32 %s191, 1
        %s2396 = smul.addr %s2395, 128
        %s2397 = scalar_lea.vmem [#allocation12], %s2396
        // Predicated region
        $region77: #{tpu_custom_call.1} parent=39 // pred_check
          %p2398 = pneg %p201
        $region78: #{tpu_custom_call.1} parent=39 // pred_check_branch
          %2400 = sbr.rel (%p2398) target = $region80
        $region79: #{tpu_custom_call.1} parent=39 // pred_region
          %s2401 = smul.u32 16, %s29
          %s2402 = smul.u32 2, %s30
          %2404 = vsyncadd %s2394, 0
          %s2405 = smul.addr %s2401, 8
          %s2406 = sadd.s32 %s2402, %s2405
          %s2407 = smul.addr %s2406, 4
          %s2408 = scalar_lea.hbm %s5, %s2407
          %s2409 = sshll.u32 %s2397, 4
          %s2410 = int_to_ptr.vmem [resolvable:$true] %s2409
          %s2411 = sshll.u32 %s2408, 4
          %s2412 = int_to_ptr.hbm [resolvable:$true] %s2411
          %2417 = dma.vmem_to_hbm [thread:$0]  %s2410, 2048, %s2412, %s2394, 128, 512, 8
        $region80: #{tpu_custom_call.1} parent=39 // pred_fallthru
          _
      $region40: #{tpu_custom_call.1} parent=5 // pred_fallthru
        _
      %p2418 = scmp.le.s32.totalorder 2, %s19
      // Predicated region
      $region81: #{tpu_custom_call.1} parent=5 // pred_check
        %p2419 = pneg %p2418
      $region82: #{tpu_custom_call.1} parent=5 // pred_check_branch
        %2421 = sbr.rel (%p2419) target = $region84
      $region83: #{tpu_custom_call.1} parent=5 // pred_region
        %s2422 = ssub.s32 %s19, 2
        // Predicated region
        $region85: #{tpu_custom_call.1} parent=83 // pred_check
          %p2423 = pneg %p207
        $region86: #{tpu_custom_call.1} parent=83 // pred_check_branch
          %2425 = sbr.rel (%p2423) target = $region88
        $region87: #{tpu_custom_call.1} parent=83 // pred_region
          %s2426 = sand.u32 %s192, 1
          %s2427 = scalar_lea.sflag [#allocation5], %s2426
          %s2428 = sand.u32 %s192, 1
          %s2429 = smul.addr %s2428, 128
          %s2430 = scalar_lea.vmem [#allocation12], %s2429
          %2432 = dma.done %s2427, 2048
        $region88: #{tpu_custom_call.1} parent=83 // pred_fallthru
          _
      $region84: #{tpu_custom_call.1} parent=5 // pred_fallthru
        _
    $region6: #{tpu_custom_call.1} parent=1 // loop_footer
      %s23 = sadd.s32 1, %s19
    $region7: #{tpu_custom_call.1} parent=1 // loop_footer_branch
      %18 = sbr.rel target = $region3
    $region8: #{tpu_custom_call.1} parent=1 // loop_exit
      _
    %2433 = vsyncpa [#allocation4], 1
    %s2434 = scalar_lea.sflag [#allocation4], 1
    %2435 = vsyncpa %s2434, 1
    %2436 = vsyncpa [#allocation7], 1
    %s2437 = scalar_lea.sflag [#allocation7], 1
    %2438 = vsyncpa %s2437, 1
    %2439 = vsyncpa [#allocation10], 1
    %2440 = vsyncpa [#allocation5], 1
    %s2441 = scalar_lea.sflag [#allocation5], 1
    %2442 = vsyncpa %s2441, 1

</llo_original>
